<compile_context>
chip_gen: v7x
topology: tpu7x:2x2x1
jax: 0.10.0
libtpu: 0.0.40
codegen_flags: <defaults>
</compile_context>

<pallas_src>
import functools

import jax
import jax.numpy as jnp
from jax.experimental import pallas as pl
from jax.experimental.pallas import tpu as pltpu


def _pick_tile(dim, prefs):
    """Largest preferred tile that evenly divides `dim`, else the full dim."""
    for p in prefs:
        if dim % p == 0:
            return p
    return dim


def _vmem_limit_or_none(estimate_bytes):
    """Only raise the scoped-VMEM limit when the estimated footprint needs it."""
    if estimate_bytes <= 24 * 2**20:
        return None
    return int(min(estimate_bytes * 5 // 4, 100 * 2**20))


# ----------------------------------------------------------------------------
# Kernel 1: hoisted input projection  XG = X @ W_ih^T + bias
# ----------------------------------------------------------------------------
def _input_proj_kernel(x_ref, w_ref, b_ref, o_ref, acc_ref):
    k = pl.program_id(2)

    @pl.when(k == 0)
    def _():
        acc_ref[...] = jnp.zeros_like(acc_ref)

    acc_ref[...] += jnp.dot(x_ref[...], w_ref[...],
                            preferred_element_type=jnp.float32)

    @pl.when(k == pl.num_programs(2) - 1)
    def _():
        o_ref[...] = (acc_ref[...] + b_ref[...]).astype(o_ref.dtype)


# ----------------------------------------------------------------------------
# Kernel 2: time-chunked LSTM recurrence
# ----------------------------------------------------------------------------
def _lstm_recurrence_kernel(xg_ref, whh_ref, h0_ref, c0_ref,
                            out_ref, hn_ref, cn_ref,
                            h_scr, c_scr):
    """One grid step == one chunk of Tc LSTM time steps.

    xg_ref : (Tc, Bb, 4H) f32  precomputed x@W_ih^T + bias (gate order i,f,o,g)
    whh_ref: (H, 4H)      bf16 hidden->gates weights (transposed, reordered)
    h0/c0  : (Bb, H)      f32  initial states for this batch block
    out_ref: (Tc, Bb, H)       hidden states for this chunk
    hn/cn  : (Bb, H)           final hidden / cell state (resident output)
    h_scr/c_scr: (Bb, H) f32   state carried across time chunks
    """
    chunk = pl.program_id(1)          # time-chunk index (inner, "arbitrary")
    Tc = xg_ref.shape[0]
    H = h_scr.shape[-1]

    @pl.when(chunk == 0)              # new batch block -> reset the recurrence
    def _():
        h_scr[...] = h0_ref[...].astype(jnp.float32)
        c_scr[...] = c0_ref[...].astype(jnp.float32)

    whh = whh_ref[...]                # hoisted out of the step loop
    # TODO(synk): on v6e/v7x this RHS could be held in MXU weight registers via
    # pltpu.matmul_push_rhs / matmul_acc_lhs instead of re-pushing every step.

    def step(t, carry):
        h_prev, c_prev = carry
        # gates: (Bb, 4H) in reordered layout [i | f | o | g]
        gates = xg_ref[t] + jnp.dot(h_prev.astype(whh.dtype), whh,
                                    preferred_element_type=jnp.float32)
        ifo = jax.nn.sigmoid(gates[:, :3 * H])   # one contiguous sigmoid slab
        g_g = jnp.tanh(gates[:, 3 * H:])         # one tanh slab
        i_g = ifo[:, :H]
        f_g = ifo[:, H:2 * H]
        o_g = ifo[:, 2 * H:]
        c_new = f_g * c_prev + i_g * g_g
        h_new = o_g * jnp.tanh(c_new)
        out_ref[t] = h_new.astype(out_ref.dtype)
        return h_new, c_new

    h_fin, c_fin = jax.lax.fori_loop(0, Tc, step, (h_scr[...], c_scr[...]),
                                     unroll=min(Tc, 8))

    h_scr[...] = h_fin
    c_scr[...] = c_fin
    hn_ref[...] = h_fin.astype(hn_ref.dtype)
    cn_ref[...] = c_fin.astype(cn_ref.dtype)


# ----------------------------------------------------------------------------
# Wrapper
# ----------------------------------------------------------------------------
@functools.partial(jax.jit, static_argnames=("matmul_dtype",))
def lstm_encoder_pallas(embedded_inputs, w_ih, w_hh, b_ih, b_hh, h0, c0,
                        matmul_dtype=jnp.bfloat16):
    """embedded_inputs: (T, B, D) -> (outputs (T,B,H), (h_n, c_n) each (1,B,H))."""
    T, B, D = embedded_inputs.shape
    H4 = w_ih.shape[0]
    H = H4 // 4
    dtype = embedded_inputs.dtype
    mm_bytes = jnp.dtype(matmul_dtype).itemsize

    # Wrapper-side weight prep: combine biases, reorder gate blocks
    # [i, f, g, o] -> [i, f, o, g], transpose for x@W^T form, cast MXU operands.
    perm = jnp.concatenate([jnp.arange(0, 2 * H),
                            jnp.arange(3 * H, 4 * H),
                            jnp.arange(2 * H, 3 * H)])
    wih_t = jnp.asarray(w_ih, jnp.float32)[perm].T.astype(matmul_dtype)  # (D, 4H)
    whh_t = jnp.asarray(w_hh, jnp.float32)[perm].T.astype(matmul_dtype)  # (H, 4H)
    bias = (jnp.asarray(b_ih, jnp.float32)
            + jnp.asarray(b_hh, jnp.float32))[perm].reshape(1, H4)

    h0_2d = jnp.asarray(h0, jnp.float32).reshape(B, H)
    c0_2d = jnp.asarray(c0, jnp.float32).reshape(B, H)

    # ---------------- 1) hoisted input projection (one big GEMM) -------------
    M, K, N = T * B, D, H4
    x2d = embedded_inputs.reshape(M, K).astype(matmul_dtype)
    tm = _pick_tile(M, (512, 256, 128, 64, 32, 16, 8))
    tn = _pick_tile(N, (256, 128))
    tk = _pick_tile(K, (512, 256, 128))
    gemm_est = 2 * (tm * tk + tk * tn) * mm_bytes + 3 * tm * tn * 4

    xg2d = pl.pallas_call(
        _input_proj_kernel,
        out_shape=jax.ShapeDtypeStruct((M, N), jnp.float32),
        grid_spec=pltpu.PrefetchScalarGridSpec(
            num_scalar_prefetch=0,
            grid=(M // tm, N // tn, K // tk),
            in_specs=[
                pl.BlockSpec((tm, tk), lambda i, j, k: (i, k)),   # X
                pl.BlockSpec((tk, tn), lambda i, j, k: (k, j)),   # W_ih^T
                pl.BlockSpec((1, tn), lambda i, j, k: (0, j)),    # bias
            ],
            out_specs=pl.BlockSpec((tm, tn), lambda i, j, k: (i, j)),
            scratch_shapes=[pltpu.VMEM((tm, tn), jnp.float32)],
        ),
        compiler_params=pltpu.CompilerParams(
            dimension_semantics=("parallel", "parallel", "arbitrary"),
            vmem_limit_bytes=_vmem_limit_or_none(gemm_est),
        ),
    )(x2d, wih_t, bias)
    xg = xg2d.reshape(T, B, H4)        # free metadata reshape

    # ---------------- 2) time-chunked recurrence -----------------------------
    Tc = _pick_tile(T, (128, 64, 32, 16, 8, 4, 2))   # time steps per grid step
    Bb = _pick_tile(B, (128, 64, 32, 16, 8))         # batch block ("parallel")
    ebytes = jnp.dtype(dtype).itemsize
    rec_est = (2 * Tc * Bb * H4 * 4                  # xg blocks (double-buffered)
               + 2 * Tc * Bb * max(H, 128) * ebytes  # output blocks
               + 2 * H * H4 * mm_bytes               # W_hh^T
               + 8 * Bb * max(H, 128) * 4)           # states + scratch

    outputs, h_n, c_n = pl.pallas_call(
        _lstm_recurrence_kernel,
        out_shape=(
            jax.ShapeDtypeStruct((T, B, H), dtype),
            jax.ShapeDtypeStruct((B, H), dtype),
            jax.ShapeDtypeStruct((B, H), dtype),
        ),
        grid_spec=pltpu.PrefetchScalarGridSpec(
            num_scalar_prefetch=0,
            grid=(B // Bb, T // Tc),                 # (batch-parallel, time)
            in_specs=[
                pl.BlockSpec((Tc, Bb, H4), lambda b, c: (c, b, 0)),  # xg chunk
                pl.BlockSpec((H, H4), lambda b, c: (0, 0)),          # W_hh^T
                pl.BlockSpec((Bb, H), lambda b, c: (b, 0)),          # h0
                pl.BlockSpec((Bb, H), lambda b, c: (b, 0)),          # c0
            ],
            out_specs=[
                pl.BlockSpec((Tc, Bb, H), lambda b, c: (c, b, 0)),   # hidden states
                pl.BlockSpec((Bb, H), lambda b, c: (b, 0)),          # h_n (resident)
                pl.BlockSpec((Bb, H), lambda b, c: (b, 0)),          # c_n (resident)
            ],
            scratch_shapes=[
                pltpu.VMEM((Bb, H), jnp.float32),    # h carry across chunks
                pltpu.VMEM((Bb, H), jnp.float32),    # c carry across chunks
            ],
        ),
        compiler_params=pltpu.CompilerParams(
            dimension_semantics=("parallel", "arbitrary"),
            vmem_limit_bytes=_vmem_limit_or_none(rec_est),
        ),
    )(xg, whh_t, h0_2d, c0_2d)

    return outputs, (h_n[None], c_n[None])


# ----------------------------------------------------------------------------
# Pure-JAX reference (PyTorch nn.LSTM semantics, gate order i, f, g, o)
# ----------------------------------------------------------------------------
def lstm_encoder_ref(embedded_inputs, w_ih, w_hh, b_ih, b_hh, h0, c0,
                     matmul_dtype=jnp.float32):
    H = w_hh.shape[1]
    b = (b_ih + b_hh).astype(jnp.float32)
    wih_t = w_ih.T.astype(matmul_dtype)
    whh_t = w_hh.T.astype(matmul_dtype)

    def step(carry, x_t):
        h, c = carry
        gates = (jnp.dot(x_t.astype(matmul_dtype), wih_t,
                         preferred_element_type=jnp.float32)
                 + jnp.dot(h.astype(matmul_dtype), whh_t,
                           preferred_element_type=jnp.float32) + b)
        i = jax.nn.sigmoid(gates[:, 0 * H:1 * H])
        f = jax.nn.sigmoid(gates[:, 1 * H:2 * H])
        g = jnp.tanh(gates[:, 2 * H:3 * H])
        o = jax.nn.sigmoid(gates[:, 3 * H:4 * H])
        c_new = f * c + i * g
        h_new = o * jnp.tanh(c_new)
        return (h_new, c_new), h_new

    (h_n, c_n), outs = jax.lax.scan(
        step, (h0[0].astype(jnp.float32), c0[0].astype(jnp.float32)),
        embedded_inputs)
    return outs, (h_n[None], c_n[None])


class PtNetEncoderPallas:
    """Mirror of ptNetEncoder: returns the encoder's hidden states."""

    def __init__(self, params):
        self.params = params  # dict: w_ih, w_hh, b_ih, b_hh, hidden

    def __call__(self, embedded_inputs, encoder_h0=None, encoder_c0=None):
        T, B, _ = embedded_inputs.shape
        H = self.params["hidden"]
        if encoder_h0 is None:
            encoder_h0 = jnp.zeros((1, B, H), embedded_inputs.dtype)
        if encoder_c0 is None:
            encoder_c0 = jnp.zeros((1, B, H), embedded_inputs.dtype)
        return lstm_encoder_pallas(
            embedded_inputs,
            self.params["w_ih"], self.params["w_hh"],
            self.params["b_ih"], self.params["b_hh"],
            encoder_h0, encoder_c0)


if __name__ == "__main__":
    # Small shapes: seq=8, batch=8, input_dim=32, hidden=32 (4H = 128 lanes).
    T, B, D, H = 8, 8, 32, 32

    key = jax.random.PRNGKey(0)
    ks = jax.random.split(key, 7)
    scale = 1.0 / jnp.sqrt(H)
    params = {
        "w_ih": jax.random.uniform(ks[0], (4 * H, D), jnp.float32, -scale, scale),
        "w_hh": jax.random.uniform(ks[1], (4 * H, H), jnp.float32, -scale, scale),
        "b_ih": jax.random.uniform(ks[2], (4 * H,), jnp.float32, -scale, scale),
        "b_hh": jax.random.uniform(ks[3], (4 * H,), jnp.float32, -scale, scale),
        "hidden": H,
    }

    embedded_inputs = jax.random.normal(ks[4], (T, B, D), jnp.float32)
    h0 = jax.random.normal(ks[5], (1, B, H), jnp.float32) * 0.1
    c0 = jax.random.normal(ks[6], (1, B, H), jnp.float32) * 0.1

    encoder = PtNetEncoderPallas(params)
    outputs, (h_n, c_n) = encoder(embedded_inputs, encoder_h0=h0, encoder_c0=c0)
    jax.block_until_ready((outputs, h_n, c_n))

    # Tight check against a reference using the same bf16-matmul / f32-accumulate
    # recipe as the kernel (validates wiring, gate reorder, recurrence).
    rb_out, (rb_h, rb_c) = lstm_encoder_ref(
        embedded_inputs, params["w_ih"], params["w_hh"],
        params["b_ih"], params["b_hh"], h0, c0, matmul_dtype=jnp.bfloat16)
    assert jnp.allclose(outputs, rb_out, atol=2e-3, rtol=2e-3)
    assert jnp.allclose(h_n, rb_h, atol=2e-3, rtol=2e-3)
    assert jnp.allclose(c_n, rb_c, atol=2e-3, rtol=2e-3)

    # Looser check against the exact f32 PyTorch-style reference (bf16 MXU
    # operands introduce ~1e-3-level differences that accumulate over T steps).
    rf_out, (rf_h, rf_c) = lstm_encoder_ref(
        embedded_inputs, params["w_ih"], params["w_hh"],
        params["b_ih"], params["b_hh"], h0, c0, matmul_dtype=jnp.float32)
    assert jnp.allclose(outputs, rf_out, atol=5e-2, rtol=5e-2)
    assert jnp.allclose(h_n, rf_h, atol=5e-2, rtol=5e-2)
    assert jnp.allclose(c_n, rf_c, atol=5e-2, rtol=5e-2)

    print("KERNEL_OK")
</pallas_src>

<mosaic_0001>
module attributes {stable_mosaic.version = 11 : i64} {
  func.func @_input_proj_kernel(%arg0: i32, %arg1: i32, %arg2: i32, %arg3: memref<64x32xbf16, #tpu.memory_space<vmem>>, %arg4: memref<32x128xbf16, #tpu.memory_space<vmem>>, %arg5: memref<1x128xf32, #tpu.memory_space<vmem>>, %arg6: memref<64x128xf32, #tpu.memory_space<vmem>>, %arg7: memref<64x128xf32, #tpu.memory_space<vmem>>) attributes {dimension_semantics = [#tpu.dimension_semantics<parallel>, #tpu.dimension_semantics<parallel>, #tpu.dimension_semantics<arbitrary>], iteration_bounds = array<i64: 1, 1, 1>, scalar_prefetch = 0 : i64, scratch_operands = 1 : i64, tpu.core_type = #tpu.core_type<tc>, window_params = [{transform_indices = @transform_0, window_bounds = array<i64: 64, 32>}, {transform_indices = @transform_1, window_bounds = array<i64: 32, 128>}, {transform_indices = @transform_2, window_bounds = array<i64: 1, 128>}, {transform_indices = @transform_3, window_bounds = array<i64: 64, 128>}]} {
    %c0_i32 = arith.constant 0 : i32
    %0 = arith.cmpi eq, %arg2, %c0_i32 : i32
    %1 = arith.extui %0 : i1 to i32
    %c0_i32_0 = arith.constant 0 : i32
    %2 = arith.cmpi ne, %1, %c0_i32_0 : i32
    scf.if %2 {
      %cst_10 = arith.constant 0.000000e+00 : f32
      %12 = vector.broadcast %cst_10 : f32 to vector<64x128xf32>
      %c0_11 = arith.constant 0 : index
      %c0_12 = arith.constant 0 : index
      %13 = vector.load %arg7[%c0_11, %c0_12] : memref<64x128xf32, #tpu.memory_space<vmem>>, vector<64x128xf32>
      tpu.vector_store %arg7[%c0_11, %c0_12], %12 {strides = array<i32>} : memref<64x128xf32, #tpu.memory_space<vmem>>, vector<64x128xf32>,
    } else {
    }
    %c0 = arith.constant 0 : index
    %c0_1 = arith.constant 0 : index
    %3 = vector.load %arg7[%c0, %c0_1] : memref<64x128xf32, #tpu.memory_space<vmem>>, vector<64x128xf32>
    %c0_2 = arith.constant 0 : index
    %c0_3 = arith.constant 0 : index
    %4 = vector.load %arg3[%c0_2, %c0_3] : memref<64x32xbf16, #tpu.memory_space<vmem>>, vector<64x32xbf16>
    %c0_4 = arith.constant 0 : index
    %c0_5 = arith.constant 0 : index
    %5 = vector.load %arg4[%c0_4, %c0_5] : memref<32x128xbf16, #tpu.memory_space<vmem>>, vector<32x128xbf16>
    %cst = arith.constant dense<0.000000e+00> : vector<64x128xf32>
    %6 = tpu.matmul %4, %5, %cst {dimension_numbers = #tpu.dot_dimension_numbers<[1], [0], [0], [1], [0, 0, 1, 1], [], []>} : vector<64x32xbf16>, vector<32x128xbf16>, vector<64x128xf32> -> vector<64x128xf32>
    %7 = arith.addf %3, %6 : vector<64x128xf32>
    %c0_6 = arith.constant 0 : index
    %c0_7 = arith.constant 0 : index
    %8 = vector.load %arg7[%c0_6, %c0_7] : memref<64x128xf32, #tpu.memory_space<vmem>>, vector<64x128xf32>
    tpu.vector_store %arg7[%c0_6, %c0_7], %7 {strides = array<i32>} : memref<64x128xf32, #tpu.memory_space<vmem>>, vector<64x128xf32>,
    %c0_i32_8 = arith.constant 0 : i32
    %9 = arith.cmpi eq, %arg2, %c0_i32_8 : i32
    %10 = arith.extui %9 : i1 to i32
    %c0_i32_9 = arith.constant 0 : i32
    %11 = arith.cmpi ne, %10, %c0_i32_9 : i32
    scf.if %11 {
      %c0_10 = arith.constant 0 : index
      %c0_11 = arith.constant 0 : index
      %12 = vector.load %arg7[%c0_10, %c0_11] : memref<64x128xf32, #tpu.memory_space<vmem>>, vector<64x128xf32>
      %c0_12 = arith.constant 0 : index
      %c0_13 = arith.constant 0 : index
      %13 = vector.load %arg5[%c0_12, %c0_13] : memref<1x128xf32, #tpu.memory_space<vmem>>, vector<1x128xf32>
      %14 = vector.broadcast %13 : vector<1x128xf32> to vector<64x128xf32>
      %15 = arith.addf %12, %14 : vector<64x128xf32>
      %c0_14 = arith.constant 0 : index
      %c0_15 = arith.constant 0 : index
      %16 = vector.load %arg6[%c0_14, %c0_15] : memref<64x128xf32, #tpu.memory_space<vmem>>, vector<64x128xf32>
      tpu.vector_store %arg6[%c0_14, %c0_15], %15 {strides = array<i32>} : memref<64x128xf32, #tpu.memory_space<vmem>>, vector<64x128xf32>,
    } else {
    }
    return
  }
  func.func @transform_0(%arg0: i32, %arg1: i32, %arg2: i32) -> (i32, i32) {
    %c0_i32 = arith.constant 0 : i32
    return %arg0, %arg2 : i32, i32
  }
  func.func @transform_1(%arg0: i32, %arg1: i32, %arg2: i32) -> (i32, i32) {
    %c0_i32 = arith.constant 0 : i32
    return %arg2, %arg1 : i32, i32
  }
  func.func @transform_2(%arg0: i32, %arg1: i32, %arg2: i32) -> (i32, i32) {
    %c0_i32 = arith.constant 0 : i32
    %c0_i32_0 = arith.constant 0 : i32
    return %c0_i32, %arg1 : i32, i32
  }
  func.func @transform_3(%arg0: i32, %arg1: i32, %arg2: i32) -> (i32, i32) {
    %c0_i32 = arith.constant 0 : i32
    return %arg0, %arg1 : i32, i32
  }
}

module attributes {stable_mosaic.version = 11 : i64} {
  func.func @_lstm_recurrence_kernel(%arg0: i32, %arg1: i32, %arg2: memref<8x8x128xf32, #tpu.memory_space<vmem>>, %arg3: memref<32x128xbf16, #tpu.memory_space<vmem>>, %arg4: memref<8x32xf32, #tpu.memory_space<vmem>>, %arg5: memref<8x32xf32, #tpu.memory_space<vmem>>, %arg6: memref<8x8x32xf32, #tpu.memory_space<vmem>>, %arg7: memref<8x32xf32, #tpu.memory_space<vmem>>, %arg8: memref<8x32xf32, #tpu.memory_space<vmem>>, %arg9: memref<8x32xf32, #tpu.memory_space<vmem>>, %arg10: memref<8x32xf32, #tpu.memory_space<vmem>>) attributes {dimension_semantics = [#tpu.dimension_semantics<parallel>, #tpu.dimension_semantics<arbitrary>], iteration_bounds = array<i64: 1, 1>, scalar_prefetch = 0 : i64, scratch_operands = 2 : i64, tpu.core_type = #tpu.core_type<tc>, window_params = [{transform_indices = @transform_0, window_bounds = array<i64: 8, 8, 128>}, {pipeline_mode = #tpu.pipeline_mode<synchronous>, transform_indices = @transform_1, window_bounds = array<i64: 32, 128>}, {transform_indices = @transform_2, window_bounds = array<i64: 8, 32>}, {transform_indices = @transform_3, window_bounds = array<i64: 8, 32>}, {transform_indices = @transform_4, window_bounds = array<i64: 8, 8, 32>}, {transform_indices = @transform_5, window_bounds = array<i64: 8, 32>}, {transform_indices = @transform_6, window_bounds = array<i64: 8, 32>}]} {
    %c0_i32 = arith.constant 0 : i32
    %0 = arith.cmpi eq, %arg1, %c0_i32 : i32
    %1 = arith.extui %0 : i1 to i32
    %c0_i32_0 = arith.constant 0 : i32
    %2 = arith.cmpi ne, %1, %c0_i32_0 : i32
    scf.if %2 {
      %c0_62 = arith.constant 0 : index
      %c0_63 = arith.constant 0 : index
      %218 = vector.load %arg4[%c0_62, %c0_63] : memref<8x32xf32, #tpu.memory_space<vmem>>, vector<8x32xf32>
      %c0_64 = arith.constant 0 : index
      %c0_65 = arith.constant 0 : index
      %219 = vector.load %arg9[%c0_64, %c0_65] : memref<8x32xf32, #tpu.memory_space<vmem>>, vector<8x32xf32>
      tpu.vector_store %arg9[%c0_64, %c0_65], %218 {strides = array<i32>} : memref<8x32xf32, #tpu.memory_space<vmem>>, vector<8x32xf32>,
      %c0_66 = arith.constant 0 : index
      %c0_67 = arith.constant 0 : index
      %220 = vector.load %arg5[%c0_66, %c0_67] : memref<8x32xf32, #tpu.memory_space<vmem>>, vector<8x32xf32>
      %c0_68 = arith.constant 0 : index
      %c0_69 = arith.constant 0 : index
      %221 = vector.load %arg10[%c0_68, %c0_69] : memref<8x32xf32, #tpu.memory_space<vmem>>, vector<8x32xf32>
      tpu.vector_store %arg10[%c0_68, %c0_69], %220 {strides = array<i32>} : memref<8x32xf32, #tpu.memory_space<vmem>>, vector<8x32xf32>,
    } else {
    }
    %c0 = arith.constant 0 : index
    %c0_1 = arith.constant 0 : index
    %3 = vector.load %arg3[%c0, %c0_1] : memref<32x128xbf16, #tpu.memory_space<vmem>>, vector<32x128xbf16>
    %c0_2 = arith.constant 0 : index
    %c0_3 = arith.constant 0 : index
    %4 = vector.load %arg9[%c0_2, %c0_3] : memref<8x32xf32, #tpu.memory_space<vmem>>, vector<8x32xf32>
    %c0_4 = arith.constant 0 : index
    %c0_5 = arith.constant 0 : index
    %5 = vector.load %arg10[%c0_4, %c0_5] : memref<8x32xf32, #tpu.memory_space<vmem>>, vector<8x32xf32>
    %c0_i32_6 = arith.constant 0 : i32
    %6 = arith.index_cast %c0_i32_6 : i32 to index
    %c0_7 = arith.constant 0 : index
    %c0_8 = arith.constant 0 : index
    %7 = vector.load %arg2[%6, %c0_7, %c0_8] : memref<8x8x128xf32, #tpu.memory_space<vmem>>, vector<1x8x128xf32>
    %8 = vector.shape_cast %7 : vector<1x8x128xf32> to vector<8x128xf32>
    %9 = arith.truncf %4 : vector<8x32xf32> to vector<8x32xbf16>
    %cst = arith.constant dense<0.000000e+00> : vector<8x128xf32>
    %10 = tpu.matmul %9, %3, %cst {dimension_numbers = #tpu.dot_dimension_numbers<[1], [0], [0], [1], [0, 0, 1, 1], [], []>} : vector<8x32xbf16>, vector<32x128xbf16>, vector<8x128xf32> -> vector<8x128xf32>
    %11 = arith.addf %8, %10 : vector<8x128xf32>
    %12 = vector.extract_strided_slice %11 {offsets = [0, 0], sizes = [8, 96], strides = [1, 1]} : vector<8x128xf32> to vector<8x96xf32>
    %13 = arith.negf %12 : vector<8x96xf32>
    %14 = math.exp %13 : vector<8x96xf32>
    %cst_9 = arith.constant 1.000000e+00 : f32
    %15 = vector.broadcast %cst_9 : f32 to vector<8x96xf32>
    %16 = arith.addf %15, %14 : vector<8x96xf32>
    %17 = arith.divf %15, %16 : vector<8x96xf32>
    %18 = vector.extract_strided_slice %11 {offsets = [0, 96], sizes = [8, 32], strides = [1, 1]} : vector<8x128xf32> to vector<8x32xf32>
    %19 = math.tanh %18 : vector<8x32xf32>
    %20 = vector.extract_strided_slice %17 {offsets = [0, 0], sizes = [8, 32], strides = [1, 1]} : vector<8x96xf32> to vector<8x32xf32>
    %21 = vector.extract_strided_slice %17 {offsets = [0, 32], sizes = [8, 32], strides = [1, 1]} : vector<8x96xf32> to vector<8x32xf32>
    %22 = vector.extract_strided_slice %17 {offsets = [0, 64], sizes = [8, 32], strides = [1, 1]} : vector<8x96xf32> to vector<8x32xf32>
    %23 = arith.mulf %21, %5 : vector<8x32xf32>
    %24 = arith.mulf %20, %19 : vector<8x32xf32>
    %25 = arith.addf %23, %24 : vector<8x32xf32>
    %26 = math.tanh %25 : vector<8x32xf32>
    %27 = arith.mulf %22, %26 : vector<8x32xf32>
    %28 = arith.index_cast %c0_i32_6 : i32 to index
    %c0_10 = arith.constant 0 : index
    %c0_11 = arith.constant 0 : index
    %29 = vector.load %arg6[%28, %c0_10, %c0_11] : memref<8x8x32xf32, #tpu.memory_space<vmem>>, vector<1x8x32xf32>
    %30 = vector.shape_cast %29 : vector<1x8x32xf32> to vector<8x32xf32>
    %31 = vector.shape_cast %27 : vector<8x32xf32> to vector<1x8x32xf32>
    tpu.vector_store %arg6[%28, %c0_10, %c0_11], %31 {strides = array<i32>} : memref<8x8x32xf32, #tpu.memory_space<vmem>>, vector<1x8x32xf32>,
    %c1_i32 = arith.constant 1 : i32
    %32 = arith.index_cast %c1_i32 : i32 to index
    %c0_12 = arith.constant 0 : index
    %c0_13 = arith.constant 0 : index
    %33 = vector.load %arg2[%32, %c0_12, %c0_13] : memref<8x8x128xf32, #tpu.memory_space<vmem>>, vector<1x8x128xf32>
    %34 = vector.shape_cast %33 : vector<1x8x128xf32> to vector<8x128xf32>
    %35 = arith.truncf %27 : vector<8x32xf32> to vector<8x32xbf16>
    %cst_14 = arith.constant dense<0.000000e+00> : vector<8x128xf32>
    %36 = tpu.matmul %35, %3, %cst_14 {dimension_numbers = #tpu.dot_dimension_numbers<[1], [0], [0], [1], [0, 0, 1, 1], [], []>} : vector<8x32xbf16>, vector<32x128xbf16>, vector<8x128xf32> -> vector<8x128xf32>
    %37 = arith.addf %34, %36 : vector<8x128xf32>
    %38 = vector.extract_strided_slice %37 {offsets = [0, 0], sizes = [8, 96], strides = [1, 1]} : vector<8x128xf32> to vector<8x96xf32>
    %39 = arith.negf %38 : vector<8x96xf32>
    %40 = math.exp %39 : vector<8x96xf32>
    %cst_15 = arith.constant 1.000000e+00 : f32
    %41 = vector.broadcast %cst_15 : f32 to vector<8x96xf32>
    %42 = arith.addf %41, %40 : vector<8x96xf32>
    %43 = arith.divf %41, %42 : vector<8x96xf32>
    %44 = vector.extract_strided_slice %37 {offsets = [0, 96], sizes = [8, 32], strides = [1, 1]} : vector<8x128xf32> to vector<8x32xf32>
    %45 = math.tanh %44 : vector<8x32xf32>
    %46 = vector.extract_strided_slice %43 {offsets = [0, 0], sizes = [8, 32], strides = [1, 1]} : vector<8x96xf32> to vector<8x32xf32>
    %47 = vector.extract_strided_slice %43 {offsets = [0, 32], sizes = [8, 32], strides = [1, 1]} : vector<8x96xf32> to vector<8x32xf32>
    %48 = vector.extract_strided_slice %43 {offsets = [0, 64], sizes = [8, 32], strides = [1, 1]} : vector<8x96xf32> to vector<8x32xf32>
    %49 = arith.mulf %47, %25 : vector<8x32xf32>
    %50 = arith.mulf %46, %45 : vector<8x32xf32>
    %51 = arith.addf %49, %50 : vector<8x32xf32>
    %52 = math.tanh %51 : vector<8x32xf32>
    %53 = arith.mulf %48, %52 : vector<8x32xf32>
    %54 = arith.index_cast %c1_i32 : i32 to index
    %c0_16 = arith.constant 0 : index
    %c0_17 = arith.constant 0 : index
    %55 = vector.load %arg6[%54, %c0_16, %c0_17] : memref<8x8x32xf32, #tpu.memory_space<vmem>>, vector<1x8x32xf32>
    %56 = vector.shape_cast %55 : vector<1x8x32xf32> to vector<8x32xf32>
    %57 = vector.shape_cast %53 : vector<8x32xf32> to vector<1x8x32xf32>
    tpu.vector_store %arg6[%54, %c0_16, %c0_17], %57 {strides = array<i32>} : memref<8x8x32xf32, #tpu.memory_space<vmem>>, vector<1x8x32xf32>,
    %c2_i32 = arith.constant 2 : i32
    %58 = arith.index_cast %c2_i32 : i32 to index
    %c0_18 = arith.constant 0 : index
    %c0_19 = arith.constant 0 : index
    %59 = vector.load %arg2[%58, %c0_18, %c0_19] : memref<8x8x128xf32, #tpu.memory_space<vmem>>, vector<1x8x128xf32>
    %60 = vector.shape_cast %59 : vector<1x8x128xf32> to vector<8x128xf32>
    %61 = arith.truncf %53 : vector<8x32xf32> to vector<8x32xbf16>
    %cst_20 = arith.constant dense<0.000000e+00> : vector<8x128xf32>
    %62 = tpu.matmul %61, %3, %cst_20 {dimension_numbers = #tpu.dot_dimension_numbers<[1], [0], [0], [1], [0, 0, 1, 1], [], []>} : vector<8x32xbf16>, vector<32x128xbf16>, vector<8x128xf32> -> vector<8x128xf32>
    %63 = arith.addf %60, %62 : vector<8x128xf32>
    %64 = vector.extract_strided_slice %63 {offsets = [0, 0], sizes = [8, 96], strides = [1, 1]} : vector<8x128xf32> to vector<8x96xf32>
    %65 = arith.negf %64 : vector<8x96xf32>
    %66 = math.exp %65 : vector<8x96xf32>
    %cst_21 = arith.constant 1.000000e+00 : f32
    %67 = vector.broadcast %cst_21 : f32 to vector<8x96xf32>
    %68 = arith.addf %67, %66 : vector<8x96xf32>
    %69 = arith.divf %67, %68 : vector<8x96xf32>
    %70 = vector.extract_strided_slice %63 {offsets = [0, 96], sizes = [8, 32], strides = [1, 1]} : vector<8x128xf32> to vector<8x32xf32>
    %71 = math.tanh %70 : vector<8x32xf32>
    %72 = vector.extract_strided_slice %69 {offsets = [0, 0], sizes = [8, 32], strides = [1, 1]} : vector<8x96xf32> to vector<8x32xf32>
    %73 = vector.extract_strided_slice %69 {offsets = [0, 32], sizes = [8, 32], strides = [1, 1]} : vector<8x96xf32> to vector<8x32xf32>
    %74 = vector.extract_strided_slice %69 {offsets = [0, 64], sizes = [8, 32], strides = [1, 1]} : vector<8x96xf32> to vector<8x32xf32>
    %75 = arith.mulf %73, %51 : vector<8x32xf32>
    %76 = arith.mulf %72, %71 : vector<8x32xf32>
    %77 = arith.addf %75, %76 : vector<8x32xf32>
    %78 = math.tanh %77 : vector<8x32xf32>
    %79 = arith.mulf %74, %78 : vector<8x32xf32>
    %80 = arith.index_cast %c2_i32 : i32 to index
    %c0_22 = arith.constant 0 : index
    %c0_23 = arith.constant 0 : index
    %81 = vector.load %arg6[%80, %c0_22, %c0_23] : memref<8x8x32xf32, #tpu.memory_space<vmem>>, vector<1x8x32xf32>
    %82 = vector.shape_cast %81 : vector<1x8x32xf32> to vector<8x32xf32>
    %83 = vector.shape_cast %79 : vector<8x32xf32> to vector<1x8x32xf32>
    tpu.vector_store %arg6[%80, %c0_22, %c0_23], %83 {strides = array<i32>} : memref<8x8x32xf32, #tpu.memory_space<vmem>>, vector<1x8x32xf32>,
    %c3_i32 = arith.constant 3 : i32
    %84 = arith.index_cast %c3_i32 : i32 to index
    %c0_24 = arith.constant 0 : index
    %c0_25 = arith.constant 0 : index
    %85 = vector.load %arg2[%84, %c0_24, %c0_25] : memref<8x8x128xf32, #tpu.memory_space<vmem>>, vector<1x8x128xf32>
    %86 = vector.shape_cast %85 : vector<1x8x128xf32> to vector<8x128xf32>
    %87 = arith.truncf %79 : vector<8x32xf32> to vector<8x32xbf16>
    %cst_26 = arith.constant dense<0.000000e+00> : vector<8x128xf32>
    %88 = tpu.matmul %87, %3, %cst_26 {dimension_numbers = #tpu.dot_dimension_numbers<[1], [0], [0], [1], [0, 0, 1, 1], [], []>} : vector<8x32xbf16>, vector<32x128xbf16>, vector<8x128xf32> -> vector<8x128xf32>
    %89 = arith.addf %86, %88 : vector<8x128xf32>
    %90 = vector.extract_strided_slice %89 {offsets = [0, 0], sizes = [8, 96], strides = [1, 1]} : vector<8x128xf32> to vector<8x96xf32>
    %91 = arith.negf %90 : vector<8x96xf32>
    %92 = math.exp %91 : vector<8x96xf32>
    %cst_27 = arith.constant 1.000000e+00 : f32
    %93 = vector.broadcast %cst_27 : f32 to vector<8x96xf32>
    %94 = arith.addf %93, %92 : vector<8x96xf32>
    %95 = arith.divf %93, %94 : vector<8x96xf32>
    %96 = vector.extract_strided_slice %89 {offsets = [0, 96], sizes = [8, 32], strides = [1, 1]} : vector<8x128xf32> to vector<8x32xf32>
    %97 = math.tanh %96 : vector<8x32xf32>
    %98 = vector.extract_strided_slice %95 {offsets = [0, 0], sizes = [8, 32], strides = [1, 1]} : vector<8x96xf32> to vector<8x32xf32>
    %99 = vector.extract_strided_slice %95 {offsets = [0, 32], sizes = [8, 32], strides = [1, 1]} : vector<8x96xf32> to vector<8x32xf32>
    %100 = vector.extract_strided_slice %95 {offsets = [0, 64], sizes = [8, 32], strides = [1, 1]} : vector<8x96xf32> to vector<8x32xf32>
    %101 = arith.mulf %99, %77 : vector<8x32xf32>
    %102 = arith.mulf %98, %97 : vector<8x32xf32>
    %103 = arith.addf %101, %102 : vector<8x32xf32>
    %104 = math.tanh %103 : vector<8x32xf32>
    %105 = arith.mulf %100, %104 : vector<8x32xf32>
    %106 = arith.index_cast %c3_i32 : i32 to index
    %c0_28 = arith.constant 0 : index
    %c0_29 = arith.constant 0 : index
    %107 = vector.load %arg6[%106, %c0_28, %c0_29] : memref<8x8x32xf32, #tpu.memory_space<vmem>>, vector<1x8x32xf32>
    %108 = vector.shape_cast %107 : vector<1x8x32xf32> to vector<8x32xf32>
    %109 = vector.shape_cast %105 : vector<8x32xf32> to vector<1x8x32xf32>
    tpu.vector_store %arg6[%106, %c0_28, %c0_29], %109 {strides = array<i32>} : memref<8x8x32xf32, #tpu.memory_space<vmem>>, vector<1x8x32xf32>,
    %c4_i32 = arith.constant 4 : i32
    %110 = arith.index_cast %c4_i32 : i32 to index
    %c0_30 = arith.constant 0 : index
    %c0_31 = arith.constant 0 : index
    %111 = vector.load %arg2[%110, %c0_30, %c0_31] : memref<8x8x128xf32, #tpu.memory_space<vmem>>, vector<1x8x128xf32>
    %112 = vector.shape_cast %111 : vector<1x8x128xf32> to vector<8x128xf32>
    %113 = arith.truncf %105 : vector<8x32xf32> to vector<8x32xbf16>
    %cst_32 = arith.constant dense<0.000000e+00> : vector<8x128xf32>
    %114 = tpu.matmul %113, %3, %cst_32 {dimension_numbers = #tpu.dot_dimension_numbers<[1], [0], [0], [1], [0, 0, 1, 1], [], []>} : vector<8x32xbf16>, vector<32x128xbf16>, vector<8x128xf32> -> vector<8x128xf32>
    %115 = arith.addf %112, %114 : vector<8x128xf32>
    %116 = vector.extract_strided_slice %115 {offsets = [0, 0], sizes = [8, 96], strides = [1, 1]} : vector<8x128xf32> to vector<8x96xf32>
    %117 = arith.negf %116 : vector<8x96xf32>
    %118 = math.exp %117 : vector<8x96xf32>
    %cst_33 = arith.constant 1.000000e+00 : f32
    %119 = vector.broadcast %cst_33 : f32 to vector<8x96xf32>
    %120 = arith.addf %119, %118 : vector<8x96xf32>
    %121 = arith.divf %119, %120 : vector<8x96xf32>
    %122 = vector.extract_strided_slice %115 {offsets = [0, 96], sizes = [8, 32], strides = [1, 1]} : vector<8x128xf32> to vector<8x32xf32>
    %123 = math.tanh %122 : vector<8x32xf32>
    %124 = vector.extract_strided_slice %121 {offsets = [0, 0], sizes = [8, 32], strides = [1, 1]} : vector<8x96xf32> to vector<8x32xf32>
    %125 = vector.extract_strided_slice %121 {offsets = [0, 32], sizes = [8, 32], strides = [1, 1]} : vector<8x96xf32> to vector<8x32xf32>
    %126 = vector.extract_strided_slice %121 {offsets = [0, 64], sizes = [8, 32], strides = [1, 1]} : vector<8x96xf32> to vector<8x32xf32>
    %127 = arith.mulf %125, %103 : vector<8x32xf32>
    %128 = arith.mulf %124, %123 : vector<8x32xf32>
    %129 = arith.addf %127, %128 : vector<8x32xf32>
    %130 = math.tanh %129 : vector<8x32xf32>
    %131 = arith.mulf %126, %130 : vector<8x32xf32>
    %132 = arith.index_cast %c4_i32 : i32 to index
    %c0_34 = arith.constant 0 : index
    %c0_35 = arith.constant 0 : index
    %133 = vector.load %arg6[%132, %c0_34, %c0_35] : memref<8x8x32xf32, #tpu.memory_space<vmem>>, vector<1x8x32xf32>
    %134 = vector.shape_cast %133 : vector<1x8x32xf32> to vector<8x32xf32>
    %135 = vector.shape_cast %131 : vector<8x32xf32> to vector<1x8x32xf32>
    tpu.vector_store %arg6[%132, %c0_34, %c0_35], %135 {strides = array<i32>} : memref<8x8x32xf32, #tpu.memory_space<vmem>>, vector<1x8x32xf32>,
    %c5_i32 = arith.constant 5 : i32
    %136 = arith.index_cast %c5_i32 : i32 to index
    %c0_36 = arith.constant 0 : index
    %c0_37 = arith.constant 0 : index
    %137 = vector.load %arg2[%136, %c0_36, %c0_37] : memref<8x8x128xf32, #tpu.memory_space<vmem>>, vector<1x8x128xf32>
    %138 = vector.shape_cast %137 : vector<1x8x128xf32> to vector<8x128xf32>
    %139 = arith.truncf %131 : vector<8x32xf32> to vector<8x32xbf16>
    %cst_38 = arith.constant dense<0.000000e+00> : vector<8x128xf32>
    %140 = tpu.matmul %139, %3, %cst_38 {dimension_numbers = #tpu.dot_dimension_numbers<[1], [0], [0], [1], [0, 0, 1, 1], [], []>} : vector<8x32xbf16>, vector<32x128xbf16>, vector<8x128xf32> -> vector<8x128xf32>
    %141 = arith.addf %138, %140 : vector<8x128xf32>
    %142 = vector.extract_strided_slice %141 {offsets = [0, 0], sizes = [8, 96], strides = [1, 1]} : vector<8x128xf32> to vector<8x96xf32>
    %143 = arith.negf %142 : vector<8x96xf32>
    %144 = math.exp %143 : vector<8x96xf32>
    %cst_39 = arith.constant 1.000000e+00 : f32
    %145 = vector.broadcast %cst_39 : f32 to vector<8x96xf32>
    %146 = arith.addf %145, %144 : vector<8x96xf32>
    %147 = arith.divf %145, %146 : vector<8x96xf32>
    %148 = vector.extract_strided_slice %141 {offsets = [0, 96], sizes = [8, 32], strides = [1, 1]} : vector<8x128xf32> to vector<8x32xf32>
    %149 = math.tanh %148 : vector<8x32xf32>
    %150 = vector.extract_strided_slice %147 {offsets = [0, 0], sizes = [8, 32], strides = [1, 1]} : vector<8x96xf32> to vector<8x32xf32>
    %151 = vector.extract_strided_slice %147 {offsets = [0, 32], sizes = [8, 32], strides = [1, 1]} : vector<8x96xf32> to vector<8x32xf32>
    %152 = vector.extract_strided_slice %147 {offsets = [0, 64], sizes = [8, 32], strides = [1, 1]} : vector<8x96xf32> to vector<8x32xf32>
    %153 = arith.mulf %151, %129 : vector<8x32xf32>
    %154 = arith.mulf %150, %149 : vector<8x32xf32>
    %155 = arith.addf %153, %154 : vector<8x32xf32>
    %156 = math.tanh %155 : vector<8x32xf32>
    %157 = arith.mulf %152, %156 : vector<8x32xf32>
    %158 = arith.index_cast %c5_i32 : i32 to index
    %c0_40 = arith.constant 0 : index
    %c0_41 = arith.constant 0 : index
    %159 = vector.load %arg6[%158, %c0_40, %c0_41] : memref<8x8x32xf32, #tpu.memory_space<vmem>>, vector<1x8x32xf32>
    %160 = vector.shape_cast %159 : vector<1x8x32xf32> to vector<8x32xf32>
    %161 = vector.shape_cast %157 : vector<8x32xf32> to vector<1x8x32xf32>
    tpu.vector_store %arg6[%158, %c0_40, %c0_41], %161 {strides = array<i32>} : memref<8x8x32xf32, #tpu.memory_space<vmem>>, vector<1x8x32xf32>,
    %c6_i32 = arith.constant 6 : i32
    %162 = arith.index_cast %c6_i32 : i32 to index
    %c0_42 = arith.constant 0 : index
    %c0_43 = arith.constant 0 : index
    %163 = vector.load %arg2[%162, %c0_42, %c0_43] : memref<8x8x128xf32, #tpu.memory_space<vmem>>, vector<1x8x128xf32>
    %164 = vector.shape_cast %163 : vector<1x8x128xf32> to vector<8x128xf32>
    %165 = arith.truncf %157 : vector<8x32xf32> to vector<8x32xbf16>
    %cst_44 = arith.constant dense<0.000000e+00> : vector<8x128xf32>
    %166 = tpu.matmul %165, %3, %cst_44 {dimension_numbers = #tpu.dot_dimension_numbers<[1], [0], [0], [1], [0, 0, 1, 1], [], []>} : vector<8x32xbf16>, vector<32x128xbf16>, vector<8x128xf32> -> vector<8x128xf32>
    %167 = arith.addf %164, %166 : vector<8x128xf32>
    %168 = vector.extract_strided_slice %167 {offsets = [0, 0], sizes = [8, 96], strides = [1, 1]} : vector<8x128xf32> to vector<8x96xf32>
    %169 = arith.negf %168 : vector<8x96xf32>
    %170 = math.exp %169 : vector<8x96xf32>
    %cst_45 = arith.constant 1.000000e+00 : f32
    %171 = vector.broadcast %cst_45 : f32 to vector<8x96xf32>
    %172 = arith.addf %171, %170 : vector<8x96xf32>
    %173 = arith.divf %171, %172 : vector<8x96xf32>
    %174 = vector.extract_strided_slice %167 {offsets = [0, 96], sizes = [8, 32], strides = [1, 1]} : vector<8x128xf32> to vector<8x32xf32>
    %175 = math.tanh %174 : vector<8x32xf32>
    %176 = vector.extract_strided_slice %173 {offsets = [0, 0], sizes = [8, 32], strides = [1, 1]} : vector<8x96xf32> to vector<8x32xf32>
    %177 = vector.extract_strided_slice %173 {offsets = [0, 32], sizes = [8, 32], strides = [1, 1]} : vector<8x96xf32> to vector<8x32xf32>
    %178 = vector.extract_strided_slice %173 {offsets = [0, 64], sizes = [8, 32], strides = [1, 1]} : vector<8x96xf32> to vector<8x32xf32>
    %179 = arith.mulf %177, %155 : vector<8x32xf32>
    %180 = arith.mulf %176, %175 : vector<8x32xf32>
    %181 = arith.addf %179, %180 : vector<8x32xf32>
    %182 = math.tanh %181 : vector<8x32xf32>
    %183 = arith.mulf %178, %182 : vector<8x32xf32>
    %184 = arith.index_cast %c6_i32 : i32 to index
    %c0_46 = arith.constant 0 : index
    %c0_47 = arith.constant 0 : index
    %185 = vector.load %arg6[%184, %c0_46, %c0_47] : memref<8x8x32xf32, #tpu.memory_space<vmem>>, vector<1x8x32xf32>
    %186 = vector.shape_cast %185 : vector<1x8x32xf32> to vector<8x32xf32>
    %187 = vector.shape_cast %183 : vector<8x32xf32> to vector<1x8x32xf32>
    tpu.vector_store %arg6[%184, %c0_46, %c0_47], %187 {strides = array<i32>} : memref<8x8x32xf32, #tpu.memory_space<vmem>>, vector<1x8x32xf32>,
    %c7_i32 = arith.constant 7 : i32
    %188 = arith.index_cast %c7_i32 : i32 to index
    %c0_48 = arith.constant 0 : index
    %c0_49 = arith.constant 0 : index
    %189 = vector.load %arg2[%188, %c0_48, %c0_49] : memref<8x8x128xf32, #tpu.memory_space<vmem>>, vector<1x8x128xf32>
    %190 = vector.shape_cast %189 : vector<1x8x128xf32> to vector<8x128xf32>
    %191 = arith.truncf %183 : vector<8x32xf32> to vector<8x32xbf16>
    %cst_50 = arith.constant dense<0.000000e+00> : vector<8x128xf32>
    %192 = tpu.matmul %191, %3, %cst_50 {dimension_numbers = #tpu.dot_dimension_numbers<[1], [0], [0], [1], [0, 0, 1, 1], [], []>} : vector<8x32xbf16>, vector<32x128xbf16>, vector<8x128xf32> -> vector<8x128xf32>
    %193 = arith.addf %190, %192 : vector<8x128xf32>
    %194 = vector.extract_strided_slice %193 {offsets = [0, 0], sizes = [8, 96], strides = [1, 1]} : vector<8x128xf32> to vector<8x96xf32>
    %195 = arith.negf %194 : vector<8x96xf32>
    %196 = math.exp %195 : vector<8x96xf32>
    %cst_51 = arith.constant 1.000000e+00 : f32
    %197 = vector.broadcast %cst_51 : f32 to vector<8x96xf32>
    %198 = arith.addf %197, %196 : vector<8x96xf32>
    %199 = arith.divf %197, %198 : vector<8x96xf32>
    %200 = vector.extract_strided_slice %193 {offsets = [0, 96], sizes = [8, 32], strides = [1, 1]} : vector<8x128xf32> to vector<8x32xf32>
    %201 = math.tanh %200 : vector<8x32xf32>
    %202 = vector.extract_strided_slice %199 {offsets = [0, 0], sizes = [8, 32], strides = [1, 1]} : vector<8x96xf32> to vector<8x32xf32>
    %203 = vector.extract_strided_slice %199 {offsets = [0, 32], sizes = [8, 32], strides = [1, 1]} : vector<8x96xf32> to vector<8x32xf32>
    %204 = vector.extract_strided_slice %199 {offsets = [0, 64], sizes = [8, 32], strides = [1, 1]} : vector<8x96xf32> to vector<8x32xf32>
    %205 = arith.mulf %203, %181 : vector<8x32xf32>
    %206 = arith.mulf %202, %201 : vector<8x32xf32>
    %207 = arith.addf %205, %206 : vector<8x32xf32>
    %208 = math.tanh %207 : vector<8x32xf32>
    %209 = arith.mulf %204, %208 : vector<8x32xf32>
    %210 = arith.index_cast %c7_i32 : i32 to index
    %c0_52 = arith.constant 0 : index
    %c0_53 = arith.constant 0 : index
    %211 = vector.load %arg6[%210, %c0_52, %c0_53] : memref<8x8x32xf32, #tpu.memory_space<vmem>>, vector<1x8x32xf32>
    %212 = vector.shape_cast %211 : vector<1x8x32xf32> to vector<8x32xf32>
    %213 = vector.shape_cast %209 : vector<8x32xf32> to vector<1x8x32xf32>
    tpu.vector_store %arg6[%210, %c0_52, %c0_53], %213 {strides = array<i32>} : memref<8x8x32xf32, #tpu.memory_space<vmem>>, vector<1x8x32xf32>,
    %c8_i32 = arith.constant 8 : i32
    %c0_54 = arith.constant 0 : index
    %c0_55 = arith.constant 0 : index
    %214 = vector.load %arg9[%c0_54, %c0_55] : memref<8x32xf32, #tpu.memory_space<vmem>>, vector<8x32xf32>
    tpu.vector_store %arg9[%c0_54, %c0_55], %209 {strides = array<i32>} : memref<8x32xf32, #tpu.memory_space<vmem>>, vector<8x32xf32>,
    %c0_56 = arith.constant 0 : index
    %c0_57 = arith.constant 0 : index
    %215 = vector.load %arg10[%c0_56, %c0_57] : memref<8x32xf32, #tpu.memory_space<vmem>>, vector<8x32xf32>
    tpu.vector_store %arg10[%c0_56, %c0_57], %207 {strides = array<i32>} : memref<8x32xf32, #tpu.memory_space<vmem>>, vector<8x32xf32>,
    %c0_58 = arith.constant 0 : index
    %c0_59 = arith.constant 0 : index
    %216 = vector.load %arg7[%c0_58, %c0_59] : memref<8x32xf32, #tpu.memory_space<vmem>>, vector<8x32xf32>
    tpu.vector_store %arg7[%c0_58, %c0_59], %209 {strides = array<i32>} : memref<8x32xf32, #tpu.memory_space<vmem>>, vector<8x32xf32>,
    %c0_60 = arith.constant 0 : index
    %c0_61 = arith.constant 0 : index
    %217 = vector.load %arg8[%c0_60, %c0_61] : memref<8x32xf32, #tpu.memory_space<vmem>>, vector<8x32xf32>
    tpu.vector_store %arg8[%c0_60, %c0_61], %207 {strides = array<i32>} : memref<8x32xf32, #tpu.memory_space<vmem>>, vector<8x32xf32>,
    return
  }
  func.func @transform_0(%arg0: i32, %arg1: i32) -> (i32, i32, i32) {
    %c0_i32 = arith.constant 0 : i32
    %c0_i32_0 = arith.constant 0 : i32
    return %arg1, %arg0, %c0_i32 : i32, i32, i32
  }
  func.func @transform_1(%arg0: i32, %arg1: i32) -> (i32, i32) {
    %c0_i32 = arith.constant 0 : i32
    %c0_i32_0 = arith.constant 0 : i32
    %c0_i32_1 = arith.constant 0 : i32
    return %c0_i32, %c0_i32_0 : i32, i32
  }
  func.func @transform_2(%arg0: i32, %arg1: i32) -> (i32, i32) {
    %c0_i32 = arith.constant 0 : i32
    %c0_i32_0 = arith.constant 0 : i32
    return %arg0, %c0_i32 : i32, i32
  }
  func.func @transform_3(%arg0: i32, %arg1: i32) -> (i32, i32) {
    %c0_i32 = arith.constant 0 : i32
    %c0_i32_0 = arith.constant 0 : i32
    return %arg0, %c0_i32 : i32, i32
  }
  func.func @transform_4(%arg0: i32, %arg1: i32) -> (i32, i32, i32) {
    %c0_i32 = arith.constant 0 : i32
    %c0_i32_0 = arith.constant 0 : i32
    return %arg1, %arg0, %c0_i32 : i32, i32, i32
  }
  func.func @transform_5(%arg0: i32, %arg1: i32) -> (i32, i32) {
    %c0_i32 = arith.constant 0 : i32
    %c0_i32_0 = arith.constant 0 : i32
    return %arg0, %c0_i32 : i32, i32
  }
  func.func @transform_6(%arg0: i32, %arg1: i32) -> (i32, i32) {
    %c0_i32 = arith.constant 0 : i32
    %c0_i32_0 = arith.constant 0 : i32
    return %arg0, %c0_i32 : i32, i32
  }
}

</mosaic_0001>

<llo_original>
// kernel: lstm_encoder_pallas.2
$region0: #{lstm_encoder_pallas.2}
  #allocation0 [shape = 'u32[]', space=smem, size = 0x4, offset = 0x4, fixed_abs, tag = 'smem constant byte address 0x4 - core index']
  #allocation1 [shape = 'u32[144,128]{1,0:T(1,128)}', space=vmem, size = 0x12000, scoped, tag = 'internal scratch']
  #allocation2 [shape = 'f32[64,128]{1,0:T(8,128)}', space=vmem, size = 0x8000, scoped, tag = 'scratch operand']
  %s0 = inlined_call_operand.vmem [shape: bf16[64,32], index: 0, kind: input, shape index: {}]
  %s1 = inlined_call_operand.vmem [shape: bf16[32,128], index: 1, kind: input, shape index: {}]
  %s2 = inlined_call_operand.vmem [shape: f32[1,128], index: 2, kind: input, shape index: {}]
  %s3 = inlined_call_operand.vmem [shape: f32[64,128], index: 3, kind: output, shape index: {}]
  %s4 = sld [smem:[#allocation0]]
  $region30: #{lstm_encoder_pallas.2} parent=0
    _
  %s6 = ssub.s32 1, %s4
  %s7 = scalar_select 0, %s6, %s4
  // Predicated region
  $region2: #{lstm_encoder_pallas.2} parent=0 // pred_check
    _
  $region3: #{lstm_encoder_pallas.2} parent=0 // pred_check_branch
    %9 = sbr.rel (0) target = $region5
  $region4: #{lstm_encoder_pallas.2} parent=0 // pred_region
    _
  $region5: #{lstm_encoder_pallas.2} parent=0 // pred_fallthru
    _
  // Predicated region
  $region6: #{lstm_encoder_pallas.2} parent=0 // pred_check
    _
  $region7: #{lstm_encoder_pallas.2} parent=0 // pred_check_branch
    %11 = sbr.rel (0) target = $region9
  $region8: #{lstm_encoder_pallas.2} parent=0 // pred_region
    _
  $region9: #{lstm_encoder_pallas.2} parent=0 // pred_fallthru
    _
  // Predicated region
  $region10: #{lstm_encoder_pallas.2} parent=0 // pred_check
    _
  $region11: #{lstm_encoder_pallas.2} parent=0 // pred_check_branch
    %13 = sbr.rel (0) target = $region13
  $region12: #{lstm_encoder_pallas.2} parent=0 // pred_region
    _
  $region13: #{lstm_encoder_pallas.2} parent=0 // pred_fallthru
    _
  %p15 = scmp.eq.s32.totalorder 0, 0
  // Predicated region
  $region14: #{lstm_encoder_pallas.2} parent=0 // pred_check
    %p16 = pneg %p15
  $region15: #{lstm_encoder_pallas.2} parent=0 // pred_check_branch
    %18 = sbr.rel (%p16) target = $region17
  $region16: #{lstm_encoder_pallas.2} parent=0 // pred_region
    %19 = vst [vmem:[#allocation2] sm:$0xff] 0.0
    %20 = vst [vmem:[#allocation2 + $0x8] sm:$0xff] 0.0
    %21 = vst [vmem:[#allocation2 + $0x10] sm:$0xff] 0.0
    %22 = vst [vmem:[#allocation2 + $0x18] sm:$0xff] 0.0
    %23 = vst [vmem:[#allocation2 + $0x20] sm:$0xff] 0.0
    %24 = vst [vmem:[#allocation2 + $0x28] sm:$0xff] 0.0
    %25 = vst [vmem:[#allocation2 + $0x30] sm:$0xff] 0.0
    %26 = vst [vmem:[#allocation2 + $0x38] sm:$0xff] 0.0
  $region17: #{lstm_encoder_pallas.2} parent=0 // pred_fallthru
    _
  %v27 = vld [vmem:[#allocation2] sm:$0xff]
  %v28 = vld [vmem:[#allocation2 + $0x8] sm:$0xff]
  %v29 = vld [vmem:[#allocation2 + $0x10] sm:$0xff]
  %v30 = vld [vmem:[#allocation2 + $0x18] sm:$0xff]
  %v31 = vld [vmem:[#allocation2 + $0x20] sm:$0xff]
  %v32 = vld [vmem:[#allocation2 + $0x28] sm:$0xff]
  %v33 = vld [vmem:[#allocation2 + $0x30] sm:$0xff]
  %v34 = vld [vmem:[#allocation2 + $0x38] sm:$0xff]
  %v35 = vld [vmem:[%s0] sm:$0xf]
  %v36 = vld [vmem:[%s0 + $0x4] sm:$0xf]
  %v37 = vld [vmem:[%s0 + $0x8] sm:$0xf]
  %v38 = vld [vmem:[%s0 + $0xc] sm:$0xf]
  %v39 = vld [vmem:[%s0 + $0x10] sm:$0xf]
  %v40 = vld [vmem:[%s0 + $0x14] sm:$0xf]
  %v41 = vld [vmem:[%s0 + $0x18] sm:$0xf]
  %v42 = vld [vmem:[%s0 + $0x1c] sm:$0xf]
  %v43 = vld [vmem:[%s1] sm:$0xf]
  %v44 = vld [vmem:[%s1 + $0x4] sm:$0xf]
  %v45 = vld [vmem:[%s1 + $0x8] sm:$0xf]
  %v46 = vld [vmem:[%s1 + $0xc] sm:$0xf]
  %v55 = vunpack.c.l.b16 %v35
  %v56 = vunpack.c.l.b16 %v36
  %v57 = vunpack.c.l.b16 %v37
  %v58 = vunpack.c.l.b16 %v38
  %v59 = vunpack.c.l.b16 %v39
  %v60 = vunpack.c.l.b16 %v40
  %v61 = vunpack.c.l.b16 %v41
  %v62 = vunpack.c.l.b16 %v42
  %v63 = vpack.c.b16 %v56, %v55
  %v64 = vpack.c.b16 %v58, %v57
  %v65 = vpack.c.b16 %v60, %v59
  %v66 = vpack.c.b16 %v62, %v61
  %v71 = vunpack.c.l.b16 %v43
  %v72 = vunpack.c.l.b16 %v44
  %v73 = vunpack.c.l.b16 %v45
  %v74 = vunpack.c.l.b16 %v46
  %v75 = vpack.c.b16 %v72, %v71
  %v76 = vpack.c.b16 %v74, %v73
  %vm79 = vcmask 261120
  %v81 = vsel %vm79, %v63, 0
  %v84 = vsel %vm79, %v64, 0
  %v87 = vsel %vm79, %v65, 0
  %v90 = vsel %vm79, %v66, 0
  %92 = vmatprep.subr.bf16.mxu0 0
  %93 = vmatpush1.bf16.msra.mxu0 %v75
  %94 = vmatprep.subr.bf16.mxu0 0
  %95 = vmatpush1.bf16.msra.mxu0 %v76
  %96 = vmatprep.subr.bf16.mxu0 0
  %97 = vmatpush1.bf16.msra.mxu0 0
  %98 = vmatprep.subr.bf16.mxu0 0
  %99 = vmatpush1.bf16.msra.mxu0 0
  %100 = vmatprep.subr.bf16.mxu0 0
  %101 = vmatpush1.bf16.msra.mxu0 0
  %102 = vmatprep.subr.bf16.mxu0 0
  %103 = vmatpush1.bf16.msra.mxu0 0
  %104 = vmatprep.subr.bf16.mxu0 0
  %105 = vmatpush1.bf16.msra.mxu0 0
  %106 = vmatprep.subr.bf16.mxu0 0
  %107 = vmatpush1.bf16.msra.mxu0 0
  %108 = vmatprep.subr.bf16.mxu0 0
  %109 = vmatpush1.bf16.msra.mxu0 0
  %110 = vmatprep.subr.bf16.mxu0 0
  %111 = vmatpush1.bf16.msra.mxu0 0
  %112 = vmatprep.subr.bf16.mxu0 0
  %113 = vmatpush1.bf16.msra.mxu0 0
  %114 = vmatprep.subr.bf16.mxu0 0
  %115 = vmatpush1.bf16.msra.mxu0 0
  %116 = vmatprep.subr.bf16.mxu0 0
  %117 = vmatpush1.bf16.msra.mxu0 0
  %118 = vmatprep.subr.bf16.mxu0 0
  %119 = vmatpush1.bf16.msra.mxu0 0
  %120 = vmatprep.subr.bf16.mxu0 0
  %121 = vmatpush1.bf16.msra.mxu0 0
  %122 = vmatprep.subr.bf16.mxu0 0
  %123 = vmatpush1.bf16.msra.mxu0 0
  %124 = vmatprep.mubr.bf16.mxu0 0
  %125 = vmatmul.mubr.bf16.gmra.mrb[0].mxu0 %v81
  %v126 = vpop.f32.mrb[0].mxu0
  %v127 = vadd.f32 0.0, %v126
  %v128 = vpop.f32.mrb[0].mxu0
  %v129 = vpop.f32.mrb[0].mxu0
  %v130 = vadd.f32 0.0, %v129
  %v131 = vpop.f32.mrb[0].mxu0
  %132 = vmatprep.mubr.bf16.mxu0 0
  %133 = vmatmul.mubr.bf16.gmra.mrb[0].mxu0 %v84
  %v134 = vpop.f32.mrb[0].mxu0
  %v135 = vadd.f32 0.0, %v134
  %v136 = vpop.f32.mrb[0].mxu0
  %v137 = vpop.f32.mrb[0].mxu0
  %v138 = vadd.f32 0.0, %v137
  %v139 = vpop.f32.mrb[0].mxu0
  %140 = vmatprep.mubr.bf16.mxu0 0
  %141 = vmatmul.mubr.bf16.gmra.mrb[0].mxu0 %v87
  %v142 = vpop.f32.mrb[0].mxu0
  %v143 = vadd.f32 0.0, %v142
  %v144 = vpop.f32.mrb[0].mxu0
  %v145 = vpop.f32.mrb[0].mxu0
  %v146 = vadd.f32 0.0, %v145
  %v147 = vpop.f32.mrb[0].mxu0
  %148 = vmatprep.mubr.bf16.mxu0 0
  %149 = vmatmul.mubr.bf16.gmra.mrb[0].mxu0 %v90
  %v150 = vpop.f32.mrb[0].mxu0
  %v151 = vadd.f32 0.0, %v150
  %v152 = vpop.f32.mrb[0].mxu0
  %v153 = vpop.f32.mrb[0].mxu0
  %v154 = vadd.f32 0.0, %v153
  %v155 = vpop.f32.mrb[0].mxu0
  %156 = vdwg.mxu0
  %v157 = vadd.f32 %v27, %v127
  %v158 = vadd.f32 %v28, %v130
  %v159 = vadd.f32 %v29, %v135
  %v160 = vadd.f32 %v30, %v138
  %v161 = vadd.f32 %v31, %v143
  %v162 = vadd.f32 %v32, %v146
  %v163 = vadd.f32 %v33, %v151
  %v164 = vadd.f32 %v34, %v154
  %165 = vst [vmem:[#allocation2] sm:$0xff] %v157
  %166 = vst [vmem:[#allocation2 + $0x8] sm:$0xff] %v158
  %167 = vst [vmem:[#allocation2 + $0x10] sm:$0xff] %v159
  %168 = vst [vmem:[#allocation2 + $0x18] sm:$0xff] %v160
  %169 = vst [vmem:[#allocation2 + $0x20] sm:$0xff] %v161
  %170 = vst [vmem:[#allocation2 + $0x28] sm:$0xff] %v162
  %171 = vst [vmem:[#allocation2 + $0x30] sm:$0xff] %v163
  %172 = vst [vmem:[#allocation2 + $0x38] sm:$0xff] %v164
  // Predicated region
  $region18: #{lstm_encoder_pallas.2} parent=0 // pred_check
    %p173 = pneg %p15
  $region19: #{lstm_encoder_pallas.2} parent=0 // pred_check_branch
    %175 = sbr.rel (%p173) target = $region21
  $region20: #{lstm_encoder_pallas.2} parent=0 // pred_region
    %v176 = vld [vmem:[#allocation2] sm:$0xff]
    %v177 = vld [vmem:[#allocation2 + $0x8] sm:$0xff]
    %v178 = vld [vmem:[#allocation2 + $0x10] sm:$0xff]
    %v179 = vld [vmem:[#allocation2 + $0x18] sm:$0xff]
    %v180 = vld [vmem:[#allocation2 + $0x20] sm:$0xff]
    %v181 = vld [vmem:[#allocation2 + $0x28] sm:$0xff]
    %v182 = vld [vmem:[#allocation2 + $0x30] sm:$0xff]
    %v183 = vld [vmem:[#allocation2 + $0x38] sm:$0xff]
    %v184 = vld [vmem:[%s2] sm:$0x1]
    %v186 = vlaneseq
    %v187 = vshrl.u32 %v186, 7
    %v188 = vsub.s32 0, %v187
    %v189 = vrot.slane %v184, %v188
    %v191 = vadd.f32 %v176, %v189
    %v192 = vadd.f32 %v177, %v189
    %v193 = vadd.f32 %v178, %v189
    %v194 = vadd.f32 %v179, %v189
    %v195 = vadd.f32 %v180, %v189
    %v196 = vadd.f32 %v181, %v189
    %v197 = vadd.f32 %v182, %v189
    %v198 = vadd.f32 %v183, %v189
    %199 = vst [vmem:[%s3] sm:$0xff] %v191
    %200 = vst [vmem:[%s3 + $0x8] sm:$0xff] %v192
    %201 = vst [vmem:[%s3 + $0x10] sm:$0xff] %v193
    %202 = vst [vmem:[%s3 + $0x18] sm:$0xff] %v194
    %203 = vst [vmem:[%s3 + $0x20] sm:$0xff] %v195
    %204 = vst [vmem:[%s3 + $0x28] sm:$0xff] %v196
    %205 = vst [vmem:[%s3 + $0x30] sm:$0xff] %v197
    %206 = vst [vmem:[%s3 + $0x38] sm:$0xff] %v198
  $region21: #{lstm_encoder_pallas.2} parent=0 // pred_fallthru
    _
  // Predicated region
  $region22: #{lstm_encoder_pallas.2} parent=0 // pred_check
    _
  $region23: #{lstm_encoder_pallas.2} parent=0 // pred_check_branch
    %208 = sbr.rel (0) target = $region25
  $region24: #{lstm_encoder_pallas.2} parent=0 // pred_region
    _
  $region25: #{lstm_encoder_pallas.2} parent=0 // pred_fallthru
    _
  // Predicated region
  $region26: #{lstm_encoder_pallas.2} parent=0 // pred_check
    _
  $region27: #{lstm_encoder_pallas.2} parent=0 // pred_check_branch
    %210 = sbr.rel (0) target = $region29
  $region28: #{lstm_encoder_pallas.2} parent=0 // pred_region
    _
  $region29: #{lstm_encoder_pallas.2} parent=0 // pred_fallthru
    _

// kernel: lstm_encoder_pallas.3
$region0: #{lstm_encoder_pallas.3}
  #allocation0 [shape = 'u32[]', space=smem, size = 0x4, offset = 0x4, fixed_abs, tag = 'smem constant byte address 0x4 - core index']
  #allocation1 [shape = 'u32[144,128]{1,0:T(1,128)}', space=vmem, size = 0x12000, scoped, tag = 'internal scratch']
  #allocation2 [shape = 'f32[8,32]{1,0:T(8,128)}', space=vmem, size = 0x1000, scoped, tag = 'scratch operand']
  #allocation3 [shape = 'f32[8,32]{1,0:T(8,128)}', space=vmem, size = 0x1000, scoped, tag = 'scratch operand']
  %s0 = inlined_call_operand.vmem [shape: f32[8,8,128], index: 0, kind: input, shape index: {}]
  %s1 = inlined_call_operand.vmem [shape: bf16[32,128], index: 1, kind: input, shape index: {}]
  %s2 = inlined_call_operand.vmem [shape: f32[8,32], index: 2, kind: input, shape index: {}]
  %s3 = inlined_call_operand.vmem [shape: f32[8,32], index: 3, kind: input, shape index: {}]
  %s4 = inlined_call_operand.hbm [shape: f32[8,8,32], index: 4, kind: output, shape index: {0}]
  %s5 = inlined_call_operand.hbm [shape: f32[8,32], index: 5, kind: output, shape index: {1}]
  %s6 = inlined_call_operand.hbm [shape: f32[8,32], index: 6, kind: output, shape index: {2}]
  %7 = xla_tuple %s4, %s5, %s6
  %s8 = sld [smem:[#allocation0]]
  $region46: #{lstm_encoder_pallas.3} parent=0
    _
  %s10 = ssub.s32 1, %s8
  %s11 = scalar_select 0, %s10, %s8
  $region1: #{lstm_encoder_pallas.3} parent=0
    #allocation4 [shape = 'u8[32768]{0}', space=vmem, size = 0x8000, scoped, tag = 'output window, operand 0, single buffered']
    #allocation5 [shape = 's32[1]{0}', space=sflag, size = 0x4, scoped, tag = 'scoped memory for lstm_encoder_pallas.3']
    #allocation6 [shape = 'u8[4096]{0}', space=vmem, size = 0x1000, scoped, tag = 'output window, operand 1, single buffered']
    #allocation7 [shape = 's32[1]{0}', space=sflag, size = 0x4, scoped, tag = 'scoped memory for lstm_encoder_pallas.3']
    #allocation8 [shape = 'u8[4096]{0}', space=vmem, size = 0x1000, scoped, tag = 'output window, operand 2, single buffered']
    %12 = vsyncpa [#allocation5], 0
    %13 = vsyncpa [#allocation7], 0
    // Predicated region
    $region2: #{lstm_encoder_pallas.3} parent=1 // pred_check
      _
    $region3: #{lstm_encoder_pallas.3} parent=1 // pred_check_branch
      %15 = sbr.rel (0) target = $region5
    $region4: #{lstm_encoder_pallas.3} parent=1 // pred_region
      _
    $region5: #{lstm_encoder_pallas.3} parent=1 // pred_fallthru
      _
    // Predicated region
    $region6: #{lstm_encoder_pallas.3} parent=1 // pred_check
      _
    $region7: #{lstm_encoder_pallas.3} parent=1 // pred_check_branch
      %17 = sbr.rel (0) target = $region9
    $region8: #{lstm_encoder_pallas.3} parent=1 // pred_region
      _
    $region9: #{lstm_encoder_pallas.3} parent=1 // pred_fallthru
      _
    // Predicated region
    $region10: #{lstm_encoder_pallas.3} parent=1 // pred_check
      _
    $region11: #{lstm_encoder_pallas.3} parent=1 // pred_check_branch
      %19 = sbr.rel (0) target = $region13
    $region12: #{lstm_encoder_pallas.3} parent=1 // pred_region
      _
    $region13: #{lstm_encoder_pallas.3} parent=1 // pred_fallthru
      _
    // Predicated region
    $region14: #{lstm_encoder_pallas.3} parent=1 // pred_check
      _
    $region15: #{lstm_encoder_pallas.3} parent=1 // pred_check_branch
      %21 = sbr.rel (0) target = $region17
    $region16: #{lstm_encoder_pallas.3} parent=1 // pred_region
      _
    $region17: #{lstm_encoder_pallas.3} parent=1 // pred_fallthru
      _
    %p23 = scmp.eq.s32.totalorder 0, 0
    // Predicated region
    $region18: #{lstm_encoder_pallas.3} parent=1 // pred_check
      %p24 = pneg %p23
    $region19: #{lstm_encoder_pallas.3} parent=1 // pred_check_branch
      %26 = sbr.rel (%p24) target = $region21
    $region20: #{lstm_encoder_pallas.3} parent=1 // pred_region
      %v27 = vld [vmem:[%s2] sm:$0xff]
      %vm28 = vcmask 261120
      %29 = vst.msk [vmem:[#allocation2] sm:$0xff] %vm28, %v27
      %v30 = vld [vmem:[%s3] sm:$0xff]
      %31 = vst.msk [vmem:[#allocation3] sm:$0xff] %vm28, %v30
    $region21: #{lstm_encoder_pallas.3} parent=1 // pred_fallthru
      _
    %v32 = vld [vmem:[%s1] sm:$0xf]
    %v33 = vld [vmem:[%s1 + $0x4] sm:$0xf]
    %v34 = vld [vmem:[%s1 + $0x8] sm:$0xf]
    %v35 = vld [vmem:[%s1 + $0xc] sm:$0xf]
    %v36 = vld [vmem:[#allocation2] sm:$0xff]
    %v37 = vld [vmem:[#allocation3] sm:$0xff]
    %v38 = vld [vmem:[%s0] sm:$0xff]
    %v39 = vpack.c.bf16 %v36, %v36
    %v44 = vunpack.c.l.b16 %v32
    %v45 = vunpack.c.l.b16 %v33
    %v46 = vunpack.c.l.b16 %v34
    %v47 = vunpack.c.l.b16 %v35
    %v48 = vpack.c.b16 %v45, %v44
    %v49 = vpack.c.b16 %v47, %v46
    %vm52 = vcmask 261120
    %v54 = vsel %vm52, %v39, 0
    %56 = vmatprep.subr.bf16.mxu0 0
    %57 = vmatpush1.bf16.msra.mxu0 %v48
    %58 = vmatprep.subr.bf16.mxu0 0
    %59 = vmatpush1.bf16.msra.mxu0 %v49
    %60 = vmatprep.subr.bf16.mxu0 0
    %61 = vmatpush1.bf16.msra.mxu0 0
    %62 = vmatprep.subr.bf16.mxu0 0
    %63 = vmatpush1.bf16.msra.mxu0 0
    %64 = vmatprep.subr.bf16.mxu0 0
    %65 = vmatpush1.bf16.msra.mxu0 0
    %66 = vmatprep.subr.bf16.mxu0 0
    %67 = vmatpush1.bf16.msra.mxu0 0
    %68 = vmatprep.subr.bf16.mxu0 0
    %69 = vmatpush1.bf16.msra.mxu0 0
    %70 = vmatprep.subr.bf16.mxu0 0
    %71 = vmatpush1.bf16.msra.mxu0 0
    %72 = vmatprep.subr.bf16.mxu0 0
    %73 = vmatpush1.bf16.msra.mxu0 0
    %74 = vmatprep.subr.bf16.mxu0 0
    %75 = vmatpush1.bf16.msra.mxu0 0
    %76 = vmatprep.subr.bf16.mxu0 0
    %77 = vmatpush1.bf16.msra.mxu0 0
    %78 = vmatprep.subr.bf16.mxu0 0
    %79 = vmatpush1.bf16.msra.mxu0 0
    %80 = vmatprep.subr.bf16.mxu0 0
    %81 = vmatpush1.bf16.msra.mxu0 0
    %82 = vmatprep.subr.bf16.mxu0 0
    %83 = vmatpush1.bf16.msra.mxu0 0
    %84 = vmatprep.subr.bf16.mxu0 0
    %85 = vmatpush1.bf16.msra.mxu0 0
    %86 = vmatprep.subr.bf16.mxu0 0
    %87 = vmatpush1.bf16.msra.mxu0 0
    %88 = vmatprep.mubr.bf16.mxu0 0
    %89 = vmatmul.mubr.bf16.gmra.mrb[0].mxu0 %v54
    %v90 = vpop.f32.mrb[0].mxu0
    %v91 = vadd.f32 0.0, %v90
    %v92 = vpop.f32.mrb[0].mxu0
    %v93 = vpop.f32.mrb[0].mxu0
    %v94 = vpop.f32.mrb[0].mxu0
    %95 = vdwg.mxu0
    %v96 = vadd.f32 %v38, %v91
    %v97 = vxor.u32 %v96, 2147483648
    %v98 = vmul.f32 %v97, 1.442695
    %v99 = vpow.pop %v98
    %v100 = vadd.f32 %v99, 1.0
    %v101 = vrcp.pop %v100
    %v102 = vmul.f32 1.0, %v101
    %v103 = vtanh.pop %v96
    %105 = vrot.lane.b32.xlu0 %v37, 32
    %v106 = vpop.permute.xlu0 %105
    %v108 = vmul.f32 %v102, %v106
    %110 = vrot.lane.b32.xlu0 %v103, 32
    %v111 = vpop.permute.xlu0 %110
    %v113 = vmul.f32 %v102, %v111
    %115 = vrot.lane.b32.xlu0 %v113, 32
    %v116 = vpop.permute.xlu0 %115
    %v118 = vadd.f32 %v108, %v116
    %v119 = vtanh.pop %v118
    %121 = vrot.lane.b32.xlu0 %v119, 32
    %v122 = vpop.permute.xlu0 %121
    %v124 = vmul.f32 %v102, %v122
    %126 = vrot.lane.b32.xlu0 %v124, 64
    %v127 = vpop.permute.xlu0 %126
    %129 = vst.msk [vmem:[#allocation4] sm:$0xff] %vm52, %v127
    %s130 = scalar_lea.vmem %s0, 8
    %v131 = vld [vmem:[%s130] sm:$0xff]
    %v132 = vpack.c.bf16 %v124, %v124
    %134 = vrot.lane.b32.xlu0 %v132, 64
    %v135 = vpop.permute.xlu0 %134
    %v137 = vsel %vm52, %v135, 0
    %139 = vmatprep.subr.bf16.mxu0 0
    %140 = vmatpush1.bf16.msra.mxu0 %v48
    %141 = vmatprep.subr.bf16.mxu0 0
    %142 = vmatpush1.bf16.msra.mxu0 %v49
    %143 = vmatprep.subr.bf16.mxu0 0
    %144 = vmatpush1.bf16.msra.mxu0 0
    %145 = vmatprep.subr.bf16.mxu0 0
    %146 = vmatpush1.bf16.msra.mxu0 0
    %147 = vmatprep.subr.bf16.mxu0 0
    %148 = vmatpush1.bf16.msra.mxu0 0
    %149 = vmatprep.subr.bf16.mxu0 0
    %150 = vmatpush1.bf16.msra.mxu0 0
    %151 = vmatprep.subr.bf16.mxu0 0
    %152 = vmatpush1.bf16.msra.mxu0 0
    %153 = vmatprep.subr.bf16.mxu0 0
    %154 = vmatpush1.bf16.msra.mxu0 0
    %155 = vmatprep.subr.bf16.mxu0 0
    %156 = vmatpush1.bf16.msra.mxu0 0
    %157 = vmatprep.subr.bf16.mxu0 0
    %158 = vmatpush1.bf16.msra.mxu0 0
    %159 = vmatprep.subr.bf16.mxu0 0
    %160 = vmatpush1.bf16.msra.mxu0 0
    %161 = vmatprep.subr.bf16.mxu0 0
    %162 = vmatpush1.bf16.msra.mxu0 0
    %163 = vmatprep.subr.bf16.mxu0 0
    %164 = vmatpush1.bf16.msra.mxu0 0
    %165 = vmatprep.subr.bf16.mxu0 0
    %166 = vmatpush1.bf16.msra.mxu0 0
    %167 = vmatprep.subr.bf16.mxu0 0
    %168 = vmatpush1.bf16.msra.mxu0 0
    %169 = vmatprep.subr.bf16.mxu0 0
    %170 = vmatpush1.bf16.msra.mxu0 0
    %171 = vmatprep.mubr.bf16.mxu0 0
    %172 = vmatmul.mubr.bf16.gmra.mrb[0].mxu0 %v137
    %v173 = vpop.f32.mrb[0].mxu0
    %v174 = vadd.f32 0.0, %v173
    %v175 = vpop.f32.mrb[0].mxu0
    %v176 = vpop.f32.mrb[0].mxu0
    %v177 = vpop.f32.mrb[0].mxu0
    %178 = vdwg.mxu0
    %v179 = vadd.f32 %v131, %v174
    %v180 = vxor.u32 %v179, 2147483648
    %v181 = vmul.f32 %v180, 1.442695
    %v182 = vpow.pop %v181
    %v183 = vadd.f32 %v182, 1.0
    %v184 = vrcp.pop %v183
    %v185 = vmul.f32 1.0, %v184
    %v186 = vtanh.pop %v179
    %v187 = vmul.f32 %v185, %v118
    %189 = vrot.lane.b32.xlu0 %v186, 32
    %v190 = vpop.permute.xlu0 %189
    %v192 = vmul.f32 %v185, %v190
    %194 = vrot.lane.b32.xlu0 %v192, 32
    %v195 = vpop.permute.xlu0 %194
    %v197 = vadd.f32 %v187, %v195
    %v198 = vtanh.pop %v197
    %200 = vrot.lane.b32.xlu0 %v198, 32
    %v201 = vpop.permute.xlu0 %200
    %v203 = vmul.f32 %v185, %v201
    %205 = vrot.lane.b32.xlu0 %v203, 64
    %v206 = vpop.permute.xlu0 %205
    %s208 = scalar_lea.vmem [#allocation4], 8
    %209 = vst.msk [vmem:[%s208] sm:$0xff] %vm52, %v206
    %s210 = scalar_lea.vmem %s0, 16
    %v211 = vld [vmem:[%s210] sm:$0xff]
    %v212 = vpack.c.bf16 %v203, %v203
    %214 = vrot.lane.b32.xlu0 %v212, 64
    %v215 = vpop.permute.xlu0 %214
    %v217 = vsel %vm52, %v215, 0
    %219 = vmatprep.subr.bf16.mxu0 0
    %220 = vmatpush1.bf16.msra.mxu0 %v48
    %221 = vmatprep.subr.bf16.mxu0 0
    %222 = vmatpush1.bf16.msra.mxu0 %v49
    %223 = vmatprep.subr.bf16.mxu0 0
    %224 = vmatpush1.bf16.msra.mxu0 0
    %225 = vmatprep.subr.bf16.mxu0 0
    %226 = vmatpush1.bf16.msra.mxu0 0
    %227 = vmatprep.subr.bf16.mxu0 0
    %228 = vmatpush1.bf16.msra.mxu0 0
    %229 = vmatprep.subr.bf16.mxu0 0
    %230 = vmatpush1.bf16.msra.mxu0 0
    %231 = vmatprep.subr.bf16.mxu0 0
    %232 = vmatpush1.bf16.msra.mxu0 0
    %233 = vmatprep.subr.bf16.mxu0 0
    %234 = vmatpush1.bf16.msra.mxu0 0
    %235 = vmatprep.subr.bf16.mxu0 0
    %236 = vmatpush1.bf16.msra.mxu0 0
    %237 = vmatprep.subr.bf16.mxu0 0
    %238 = vmatpush1.bf16.msra.mxu0 0
    %239 = vmatprep.subr.bf16.mxu0 0
    %240 = vmatpush1.bf16.msra.mxu0 0
    %241 = vmatprep.subr.bf16.mxu0 0
    %242 = vmatpush1.bf16.msra.mxu0 0
    %243 = vmatprep.subr.bf16.mxu0 0
    %244 = vmatpush1.bf16.msra.mxu0 0
    %245 = vmatprep.subr.bf16.mxu0 0
    %246 = vmatpush1.bf16.msra.mxu0 0
    %247 = vmatprep.subr.bf16.mxu0 0
    %248 = vmatpush1.bf16.msra.mxu0 0
    %249 = vmatprep.subr.bf16.mxu0 0
    %250 = vmatpush1.bf16.msra.mxu0 0
    %251 = vmatprep.mubr.bf16.mxu0 0
    %252 = vmatmul.mubr.bf16.gmra.mrb[0].mxu0 %v217
    %v253 = vpop.f32.mrb[0].mxu0
    %v254 = vadd.f32 0.0, %v253
    %v255 = vpop.f32.mrb[0].mxu0
    %v256 = vpop.f32.mrb[0].mxu0
    %v257 = vpop.f32.mrb[0].mxu0
    %258 = vdwg.mxu0
    %v259 = vadd.f32 %v211, %v254
    %v260 = vxor.u32 %v259, 2147483648
    %v261 = vmul.f32 %v260, 1.442695
    %v262 = vpow.pop %v261
    %v263 = vadd.f32 %v262, 1.0
    %v264 = vrcp.pop %v263
    %v265 = vmul.f32 1.0, %v264
    %v266 = vtanh.pop %v259
    %v267 = vmul.f32 %v265, %v197
    %269 = vrot.lane.b32.xlu0 %v266, 32
    %v270 = vpop.permute.xlu0 %269
    %v272 = vmul.f32 %v265, %v270
    %274 = vrot.lane.b32.xlu0 %v272, 32
    %v275 = vpop.permute.xlu0 %274
    %v277 = vadd.f32 %v267, %v275
    %v278 = vtanh.pop %v277
    %280 = vrot.lane.b32.xlu0 %v278, 32
    %v281 = vpop.permute.xlu0 %280
    %v283 = vmul.f32 %v265, %v281
    %285 = vrot.lane.b32.xlu0 %v283, 64
    %v286 = vpop.permute.xlu0 %285
    %s288 = scalar_lea.vmem [#allocation4], 16
    %289 = vst.msk [vmem:[%s288] sm:$0xff] %vm52, %v286
    %s290 = scalar_lea.vmem %s0, 24
    %v291 = vld [vmem:[%s290] sm:$0xff]
    %v292 = vpack.c.bf16 %v283, %v283
    %294 = vrot.lane.b32.xlu0 %v292, 64
    %v295 = vpop.permute.xlu0 %294
    %v297 = vsel %vm52, %v295, 0
    %299 = vmatprep.subr.bf16.mxu0 0
    %300 = vmatpush1.bf16.msra.mxu0 %v48
    %301 = vmatprep.subr.bf16.mxu0 0
    %302 = vmatpush1.bf16.msra.mxu0 %v49
    %303 = vmatprep.subr.bf16.mxu0 0
    %304 = vmatpush1.bf16.msra.mxu0 0
    %305 = vmatprep.subr.bf16.mxu0 0
    %306 = vmatpush1.bf16.msra.mxu0 0
    %307 = vmatprep.subr.bf16.mxu0 0
    %308 = vmatpush1.bf16.msra.mxu0 0
    %309 = vmatprep.subr.bf16.mxu0 0
    %310 = vmatpush1.bf16.msra.mxu0 0
    %311 = vmatprep.subr.bf16.mxu0 0
    %312 = vmatpush1.bf16.msra.mxu0 0
    %313 = vmatprep.subr.bf16.mxu0 0
    %314 = vmatpush1.bf16.msra.mxu0 0
    %315 = vmatprep.subr.bf16.mxu0 0
    %316 = vmatpush1.bf16.msra.mxu0 0
    %317 = vmatprep.subr.bf16.mxu0 0
    %318 = vmatpush1.bf16.msra.mxu0 0
    %319 = vmatprep.subr.bf16.mxu0 0
    %320 = vmatpush1.bf16.msra.mxu0 0
    %321 = vmatprep.subr.bf16.mxu0 0
    %322 = vmatpush1.bf16.msra.mxu0 0
    %323 = vmatprep.subr.bf16.mxu0 0
    %324 = vmatpush1.bf16.msra.mxu0 0
    %325 = vmatprep.subr.bf16.mxu0 0
    %326 = vmatpush1.bf16.msra.mxu0 0
    %327 = vmatprep.subr.bf16.mxu0 0
    %328 = vmatpush1.bf16.msra.mxu0 0
    %329 = vmatprep.subr.bf16.mxu0 0
    %330 = vmatpush1.bf16.msra.mxu0 0
    %331 = vmatprep.mubr.bf16.mxu0 0
    %332 = vmatmul.mubr.bf16.gmra.mrb[0].mxu0 %v297
    %v333 = vpop.f32.mrb[0].mxu0
    %v334 = vadd.f32 0.0, %v333
    %v335 = vpop.f32.mrb[0].mxu0
    %v336 = vpop.f32.mrb[0].mxu0
    %v337 = vpop.f32.mrb[0].mxu0
    %338 = vdwg.mxu0
    %v339 = vadd.f32 %v291, %v334
    %v340 = vxor.u32 %v339, 2147483648
    %v341 = vmul.f32 %v340, 1.442695
    %v342 = vpow.pop %v341
    %v343 = vadd.f32 %v342, 1.0
    %v344 = vrcp.pop %v343
    %v345 = vmul.f32 1.0, %v344
    %v346 = vtanh.pop %v339
    %v347 = vmul.f32 %v345, %v277
    %349 = vrot.lane.b32.xlu0 %v346, 32
    %v350 = vpop.permute.xlu0 %349
    %v352 = vmul.f32 %v345, %v350
    %354 = vrot.lane.b32.xlu0 %v352, 32
    %v355 = vpop.permute.xlu0 %354
    %v357 = vadd.f32 %v347, %v355
    %v358 = vtanh.pop %v357
    %360 = vrot.lane.b32.xlu0 %v358, 32
    %v361 = vpop.permute.xlu0 %360
    %v363 = vmul.f32 %v345, %v361
    %365 = vrot.lane.b32.xlu0 %v363, 64
    %v366 = vpop.permute.xlu0 %365
    %s368 = scalar_lea.vmem [#allocation4], 24
    %369 = vst.msk [vmem:[%s368] sm:$0xff] %vm52, %v366
    %s370 = scalar_lea.vmem %s0, 32
    %v371 = vld [vmem:[%s370] sm:$0xff]
    %v372 = vpack.c.bf16 %v363, %v363
    %374 = vrot.lane.b32.xlu0 %v372, 64
    %v375 = vpop.permute.xlu0 %374
    %v377 = vsel %vm52, %v375, 0
    %379 = vmatprep.subr.bf16.mxu0 0
    %380 = vmatpush1.bf16.msra.mxu0 %v48
    %381 = vmatprep.subr.bf16.mxu0 0
    %382 = vmatpush1.bf16.msra.mxu0 %v49
    %383 = vmatprep.subr.bf16.mxu0 0
    %384 = vmatpush1.bf16.msra.mxu0 0
    %385 = vmatprep.subr.bf16.mxu0 0
    %386 = vmatpush1.bf16.msra.mxu0 0
    %387 = vmatprep.subr.bf16.mxu0 0
    %388 = vmatpush1.bf16.msra.mxu0 0
    %389 = vmatprep.subr.bf16.mxu0 0
    %390 = vmatpush1.bf16.msra.mxu0 0
    %391 = vmatprep.subr.bf16.mxu0 0
    %392 = vmatpush1.bf16.msra.mxu0 0
    %393 = vmatprep.subr.bf16.mxu0 0
    %394 = vmatpush1.bf16.msra.mxu0 0
    %395 = vmatprep.subr.bf16.mxu0 0
    %396 = vmatpush1.bf16.msra.mxu0 0
    %397 = vmatprep.subr.bf16.mxu0 0
    %398 = vmatpush1.bf16.msra.mxu0 0
    %399 = vmatprep.subr.bf16.mxu0 0
    %400 = vmatpush1.bf16.msra.mxu0 0
    %401 = vmatprep.subr.bf16.mxu0 0
    %402 = vmatpush1.bf16.msra.mxu0 0
    %403 = vmatprep.subr.bf16.mxu0 0
    %404 = vmatpush1.bf16.msra.mxu0 0
    %405 = vmatprep.subr.bf16.mxu0 0
    %406 = vmatpush1.bf16.msra.mxu0 0
    %407 = vmatprep.subr.bf16.mxu0 0
    %408 = vmatpush1.bf16.msra.mxu0 0
    %409 = vmatprep.subr.bf16.mxu0 0
    %410 = vmatpush1.bf16.msra.mxu0 0
    %411 = vmatprep.mubr.bf16.mxu0 0
    %412 = vmatmul.mubr.bf16.gmra.mrb[0].mxu0 %v377
    %v413 = vpop.f32.mrb[0].mxu0
    %v414 = vadd.f32 0.0, %v413
    %v415 = vpop.f32.mrb[0].mxu0
    %v416 = vpop.f32.mrb[0].mxu0
    %v417 = vpop.f32.mrb[0].mxu0
    %418 = vdwg.mxu0
    %v419 = vadd.f32 %v371, %v414
    %v420 = vxor.u32 %v419, 2147483648
    %v421 = vmul.f32 %v420, 1.442695
    %v422 = vpow.pop %v421
    %v423 = vadd.f32 %v422, 1.0
    %v424 = vrcp.pop %v423
    %v425 = vmul.f32 1.0, %v424
    %v426 = vtanh.pop %v419
    %v427 = vmul.f32 %v425, %v357
    %429 = vrot.lane.b32.xlu0 %v426, 32
    %v430 = vpop.permute.xlu0 %429
    %v432 = vmul.f32 %v425, %v430
    %434 = vrot.lane.b32.xlu0 %v432, 32
    %v435 = vpop.permute.xlu0 %434
    %v437 = vadd.f32 %v427, %v435
    %v438 = vtanh.pop %v437
    %440 = vrot.lane.b32.xlu0 %v438, 32
    %v441 = vpop.permute.xlu0 %440
    %v443 = vmul.f32 %v425, %v441
    %445 = vrot.lane.b32.xlu0 %v443, 64
    %v446 = vpop.permute.xlu0 %445
    %s448 = scalar_lea.vmem [#allocation4], 32
    %449 = vst.msk [vmem:[%s448] sm:$0xff] %vm52, %v446
    %s450 = scalar_lea.vmem %s0, 40
    %v451 = vld [vmem:[%s450] sm:$0xff]
    %v452 = vpack.c.bf16 %v443, %v443
    %454 = vrot.lane.b32.xlu0 %v452, 64
    %v455 = vpop.permute.xlu0 %454
    %v457 = vsel %vm52, %v455, 0
    %459 = vmatprep.subr.bf16.mxu0 0
    %460 = vmatpush1.bf16.msra.mxu0 %v48
    %461 = vmatprep.subr.bf16.mxu0 0
    %462 = vmatpush1.bf16.msra.mxu0 %v49
    %463 = vmatprep.subr.bf16.mxu0 0
    %464 = vmatpush1.bf16.msra.mxu0 0
    %465 = vmatprep.subr.bf16.mxu0 0
    %466 = vmatpush1.bf16.msra.mxu0 0
    %467 = vmatprep.subr.bf16.mxu0 0
    %468 = vmatpush1.bf16.msra.mxu0 0
    %469 = vmatprep.subr.bf16.mxu0 0
    %470 = vmatpush1.bf16.msra.mxu0 0
    %471 = vmatprep.subr.bf16.mxu0 0
    %472 = vmatpush1.bf16.msra.mxu0 0
    %473 = vmatprep.subr.bf16.mxu0 0
    %474 = vmatpush1.bf16.msra.mxu0 0
    %475 = vmatprep.subr.bf16.mxu0 0
    %476 = vmatpush1.bf16.msra.mxu0 0
    %477 = vmatprep.subr.bf16.mxu0 0
    %478 = vmatpush1.bf16.msra.mxu0 0
    %479 = vmatprep.subr.bf16.mxu0 0
    %480 = vmatpush1.bf16.msra.mxu0 0
    %481 = vmatprep.subr.bf16.mxu0 0
    %482 = vmatpush1.bf16.msra.mxu0 0
    %483 = vmatprep.subr.bf16.mxu0 0
    %484 = vmatpush1.bf16.msra.mxu0 0
    %485 = vmatprep.subr.bf16.mxu0 0
    %486 = vmatpush1.bf16.msra.mxu0 0
    %487 = vmatprep.subr.bf16.mxu0 0
    %488 = vmatpush1.bf16.msra.mxu0 0
    %489 = vmatprep.subr.bf16.mxu0 0
    %490 = vmatpush1.bf16.msra.mxu0 0
    %491 = vmatprep.mubr.bf16.mxu0 0
    %492 = vmatmul.mubr.bf16.gmra.mrb[0].mxu0 %v457
    %v493 = vpop.f32.mrb[0].mxu0
    %v494 = vadd.f32 0.0, %v493
    %v495 = vpop.f32.mrb[0].mxu0
    %v496 = vpop.f32.mrb[0].mxu0
    %v497 = vpop.f32.mrb[0].mxu0
    %498 = vdwg.mxu0
    %v499 = vadd.f32 %v451, %v494
    %v500 = vxor.u32 %v499, 2147483648
    %v501 = vmul.f32 %v500, 1.442695
    %v502 = vpow.pop %v501
    %v503 = vadd.f32 %v502, 1.0
    %v504 = vrcp.pop %v503
    %v505 = vmul.f32 1.0, %v504
    %v506 = vtanh.pop %v499
    %v507 = vmul.f32 %v505, %v437
    %509 = vrot.lane.b32.xlu0 %v506, 32
    %v510 = vpop.permute.xlu0 %509
    %v512 = vmul.f32 %v505, %v510
    %514 = vrot.lane.b32.xlu0 %v512, 32
    %v515 = vpop.permute.xlu0 %514
    %v517 = vadd.f32 %v507, %v515
    %v518 = vtanh.pop %v517
    %520 = vrot.lane.b32.xlu0 %v518, 32
    %v521 = vpop.permute.xlu0 %520
    %v523 = vmul.f32 %v505, %v521
    %525 = vrot.lane.b32.xlu0 %v523, 64
    %v526 = vpop.permute.xlu0 %525
    %s528 = scalar_lea.vmem [#allocation4], 40
    %529 = vst.msk [vmem:[%s528] sm:$0xff] %vm52, %v526
    %s530 = scalar_lea.vmem %s0, 48
    %v531 = vld [vmem:[%s530] sm:$0xff]
    %v532 = vpack.c.bf16 %v523, %v523
    %534 = vrot.lane.b32.xlu0 %v532, 64
    %v535 = vpop.permute.xlu0 %534
    %v537 = vsel %vm52, %v535, 0
    %539 = vmatprep.subr.bf16.mxu0 0
    %540 = vmatpush1.bf16.msra.mxu0 %v48
    %541 = vmatprep.subr.bf16.mxu0 0
    %542 = vmatpush1.bf16.msra.mxu0 %v49
    %543 = vmatprep.subr.bf16.mxu0 0
    %544 = vmatpush1.bf16.msra.mxu0 0
    %545 = vmatprep.subr.bf16.mxu0 0
    %546 = vmatpush1.bf16.msra.mxu0 0
    %547 = vmatprep.subr.bf16.mxu0 0
    %548 = vmatpush1.bf16.msra.mxu0 0
    %549 = vmatprep.subr.bf16.mxu0 0
    %550 = vmatpush1.bf16.msra.mxu0 0
    %551 = vmatprep.subr.bf16.mxu0 0
    %552 = vmatpush1.bf16.msra.mxu0 0
    %553 = vmatprep.subr.bf16.mxu0 0
    %554 = vmatpush1.bf16.msra.mxu0 0
    %555 = vmatprep.subr.bf16.mxu0 0
    %556 = vmatpush1.bf16.msra.mxu0 0
    %557 = vmatprep.subr.bf16.mxu0 0
    %558 = vmatpush1.bf16.msra.mxu0 0
    %559 = vmatprep.subr.bf16.mxu0 0
    %560 = vmatpush1.bf16.msra.mxu0 0
    %561 = vmatprep.subr.bf16.mxu0 0
    %562 = vmatpush1.bf16.msra.mxu0 0
    %563 = vmatprep.subr.bf16.mxu0 0
    %564 = vmatpush1.bf16.msra.mxu0 0
    %565 = vmatprep.subr.bf16.mxu0 0
    %566 = vmatpush1.bf16.msra.mxu0 0
    %567 = vmatprep.subr.bf16.mxu0 0
    %568 = vmatpush1.bf16.msra.mxu0 0
    %569 = vmatprep.subr.bf16.mxu0 0
    %570 = vmatpush1.bf16.msra.mxu0 0
    %571 = vmatprep.mubr.bf16.mxu0 0
    %572 = vmatmul.mubr.bf16.gmra.mrb[0].mxu0 %v537
    %v573 = vpop.f32.mrb[0].mxu0
    %v574 = vadd.f32 0.0, %v573
    %v575 = vpop.f32.mrb[0].mxu0
    %v576 = vpop.f32.mrb[0].mxu0
    %v577 = vpop.f32.mrb[0].mxu0
    %578 = vdwg.mxu0
    %v579 = vadd.f32 %v531, %v574
    %v580 = vxor.u32 %v579, 2147483648
    %v581 = vmul.f32 %v580, 1.442695
    %v582 = vpow.pop %v581
    %v583 = vadd.f32 %v582, 1.0
    %v584 = vrcp.pop %v583
    %v585 = vmul.f32 1.0, %v584
    %v586 = vtanh.pop %v579
    %v587 = vmul.f32 %v585, %v517
    %589 = vrot.lane.b32.xlu0 %v586, 32
    %v590 = vpop.permute.xlu0 %589
    %v592 = vmul.f32 %v585, %v590
    %594 = vrot.lane.b32.xlu0 %v592, 32
    %v595 = vpop.permute.xlu0 %594
    %v597 = vadd.f32 %v587, %v595
    %v598 = vtanh.pop %v597
    %600 = vrot.lane.b32.xlu0 %v598, 32
    %v601 = vpop.permute.xlu0 %600
    %v603 = vmul.f32 %v585, %v601
    %605 = vrot.lane.b32.xlu0 %v603, 64
    %v606 = vpop.permute.xlu0 %605
    %s608 = scalar_lea.vmem [#allocation4], 48
    %609 = vst.msk [vmem:[%s608] sm:$0xff] %vm52, %v606
    %s610 = scalar_lea.vmem %s0, 56
    %v611 = vld [vmem:[%s610] sm:$0xff]
    %v612 = vpack.c.bf16 %v603, %v603
    %614 = vrot.lane.b32.xlu0 %v612, 64
    %v615 = vpop.permute.xlu0 %614
    %v617 = vsel %vm52, %v615, 0
    %619 = vmatprep.subr.bf16.mxu0 0
    %620 = vmatpush1.bf16.msra.mxu0 %v48
    %621 = vmatprep.subr.bf16.mxu0 0
    %622 = vmatpush1.bf16.msra.mxu0 %v49
    %623 = vmatprep.subr.bf16.mxu0 0
    %624 = vmatpush1.bf16.msra.mxu0 0
    %625 = vmatprep.subr.bf16.mxu0 0
    %626 = vmatpush1.bf16.msra.mxu0 0
    %627 = vmatprep.subr.bf16.mxu0 0
    %628 = vmatpush1.bf16.msra.mxu0 0
    %629 = vmatprep.subr.bf16.mxu0 0
    %630 = vmatpush1.bf16.msra.mxu0 0
    %631 = vmatprep.subr.bf16.mxu0 0
    %632 = vmatpush1.bf16.msra.mxu0 0
    %633 = vmatprep.subr.bf16.mxu0 0
    %634 = vmatpush1.bf16.msra.mxu0 0
    %635 = vmatprep.subr.bf16.mxu0 0
    %636 = vmatpush1.bf16.msra.mxu0 0
    %637 = vmatprep.subr.bf16.mxu0 0
    %638 = vmatpush1.bf16.msra.mxu0 0
    %639 = vmatprep.subr.bf16.mxu0 0
    %640 = vmatpush1.bf16.msra.mxu0 0
    %641 = vmatprep.subr.bf16.mxu0 0
    %642 = vmatpush1.bf16.msra.mxu0 0
    %643 = vmatprep.subr.bf16.mxu0 0
    %644 = vmatpush1.bf16.msra.mxu0 0
    %645 = vmatprep.subr.bf16.mxu0 0
    %646 = vmatpush1.bf16.msra.mxu0 0
    %647 = vmatprep.subr.bf16.mxu0 0
    %648 = vmatpush1.bf16.msra.mxu0 0
    %649 = vmatprep.subr.bf16.mxu0 0
    %650 = vmatpush1.bf16.msra.mxu0 0
    %651 = vmatprep.mubr.bf16.mxu0 0
    %652 = vmatmul.mubr.bf16.gmra.mrb[0].mxu0 %v617
    %v653 = vpop.f32.mrb[0].mxu0
    %v654 = vadd.f32 0.0, %v653
    %v655 = vpop.f32.mrb[0].mxu0
    %v656 = vpop.f32.mrb[0].mxu0
    %v657 = vpop.f32.mrb[0].mxu0
    %658 = vdwg.mxu0
    %v659 = vadd.f32 %v611, %v654
    %v660 = vxor.u32 %v659, 2147483648
    %v661 = vmul.f32 %v660, 1.442695
    %v662 = vpow.pop %v661
    %v663 = vadd.f32 %v662, 1.0
    %v664 = vrcp.pop %v663
    %v665 = vmul.f32 1.0, %v664
    %v666 = vtanh.pop %v659
    %v667 = vmul.f32 %v665, %v597
    %669 = vrot.lane.b32.xlu0 %v666, 32
    %v670 = vpop.permute.xlu0 %669
    %v672 = vmul.f32 %v665, %v670
    %674 = vrot.lane.b32.xlu0 %v672, 32
    %v675 = vpop.permute.xlu0 %674
    %v677 = vadd.f32 %v667, %v675
    %v678 = vtanh.pop %v677
    %680 = vrot.lane.b32.xlu0 %v678, 32
    %v681 = vpop.permute.xlu0 %680
    %v683 = vmul.f32 %v665, %v681
    %685 = vrot.lane.b32.xlu0 %v683, 64
    %v686 = vpop.permute.xlu0 %685
    %s688 = scalar_lea.vmem [#allocation4], 56
    %689 = vst.msk [vmem:[%s688] sm:$0xff] %vm52, %v686
    %690 = vst.msk [vmem:[#allocation2] sm:$0xff] %vm52, %v686
    %692 = vrot.lane.b32.xlu0 %v677, 96
    %v693 = vpop.permute.xlu0 %692
    %695 = vst.msk [vmem:[#allocation3] sm:$0xff] %vm52, %v693
    %696 = vst.msk [vmem:[#allocation6] sm:$0xff] %vm52, %v686
    %697 = vst.msk [vmem:[#allocation8] sm:$0xff] %vm52, %v693
    // Predicated region
    $region22: #{lstm_encoder_pallas.3} parent=1 // pred_check
      _
    $region23: #{lstm_encoder_pallas.3} parent=1 // pred_check_branch
      %699 = sbr.rel (0) target = $region25
    $region24: #{lstm_encoder_pallas.3} parent=1 // pred_region
      %s701 = ssub.s32 1024, 1024
      %702 = vsyncadd [#allocation5], %s701
      %s703 = sshll.u32 [#allocation4], 4
      %s704 = int_to_ptr.vmem [resolvable:$true] %s703
      %709 = dma.vmem_to_hbm [thread:$0]  %s704, 1024, %s4, [#allocation5], 128, 128, 8
    $region25: #{lstm_encoder_pallas.3} parent=1 // pred_fallthru
      _
    // Predicated region
    $region26: #{lstm_encoder_pallas.3} parent=1 // pred_check
      _
    $region27: #{lstm_encoder_pallas.3} parent=1 // pred_check_branch
      %711 = sbr.rel (0) target = $region29
    $region28: #{lstm_encoder_pallas.3} parent=1 // pred_region
      %s713 = ssub.s32 128, 128
      %714 = vsyncadd [#allocation7], %s713
      %s716 = sshll.u32 [#allocation6], 4
      %s717 = int_to_ptr.vmem [resolvable:$true] %s716
      %719 = dma.vmem_to_hbm [thread:$0]  %s717, 128, %s5, [#allocation7]
    $region29: #{lstm_encoder_pallas.3} parent=1 // pred_fallthru
      _
    // Predicated region
    $region30: #{lstm_encoder_pallas.3} parent=1 // pred_check
      _
    $region31: #{lstm_encoder_pallas.3} parent=1 // pred_check_branch
      %721 = sbr.rel (0) target = $region33
    $region32: #{lstm_encoder_pallas.3} parent=1 // pred_region
      %s723 = ssub.s32 128, 128
      %724 = vsyncadd [#allocation7], %s723
      %s726 = sshll.u32 [#allocation8], 4
      %s727 = int_to_ptr.vmem [resolvable:$true] %s726
      %729 = dma.vmem_to_hbm [thread:$0]  %s727, 128, %s6, [#allocation7]
    $region33: #{lstm_encoder_pallas.3} parent=1 // pred_fallthru
      _
    // Predicated region
    $region34: #{lstm_encoder_pallas.3} parent=1 // pred_check
      _
    $region35: #{lstm_encoder_pallas.3} parent=1 // pred_check_branch
      %731 = sbr.rel (0) target = $region37
    $region36: #{lstm_encoder_pallas.3} parent=1 // pred_region
      %732 = dma.done [#allocation5], 1024
    $region37: #{lstm_encoder_pallas.3} parent=1 // pred_fallthru
      _
    // Predicated region
    $region38: #{lstm_encoder_pallas.3} parent=1 // pred_check
      _
    $region39: #{lstm_encoder_pallas.3} parent=1 // pred_check_branch
      %734 = sbr.rel (0) target = $region41
    $region40: #{lstm_encoder_pallas.3} parent=1 // pred_region
      %735 = dma.done [#allocation7], 128
    $region41: #{lstm_encoder_pallas.3} parent=1 // pred_fallthru
      _
    // Predicated region
    $region42: #{lstm_encoder_pallas.3} parent=1 // pred_check
      _
    $region43: #{lstm_encoder_pallas.3} parent=1 // pred_check_branch
      %737 = sbr.rel (0) target = $region45
    $region44: #{lstm_encoder_pallas.3} parent=1 // pred_region
      %738 = dma.done [#allocation7], 128
    $region45: #{lstm_encoder_pallas.3} parent=1 // pred_fallthru
      _
    %739 = vsyncpa [#allocation5], 1
    %740 = vsyncpa [#allocation7], 1

</llo_original>
